<compile_context>
chip_gen: v5e
topology: v5e:2x2
jax: 0.10.0
libtpu: 0.0.40
codegen_flags: <defaults>
</compile_context>

<pallas_src>
import functools

import jax
import jax.numpy as jnp
import numpy as np
from jax import lax
from jax.experimental import pallas as pl
from jax.experimental.pallas import tpu as pltpu

EPS = 1e-5  # nn.InstanceNorm2d default


def _round_up(x, m):
    return ((x + m - 1) // m) * m


# ---------------------------------------------------------------------------
# Fused kernel: shifted-slice conv + instance-norm stats + folded affine
# (+ optional ReLU / residual add), one grid step per (image, channel-block).
# ---------------------------------------------------------------------------
def _fused_conv_in_kernel(*refs, K, Wp, Lw, inv_count, apply_relu, add_residual):
    if add_residual:
        xf_ref, w_ref, g_ref, b_ref, mask_ref, res_ref, o_ref = refs
    else:
        xf_ref, w_ref, g_ref, b_ref, mask_ref, o_ref = refs

    # K*K shifted-slice matmuls over the flat padded image (lane axis = flat
    # padded spatial index).  Static, fully-unrolled tap loop; f32 accumulation.
    z = None
    for kh in range(K):
        for kw in range(K):
            kidx = kh * K + kw
            off = kh * Wp + kw
            x_k = xf_ref[0, :, pl.ds(off, Lw)]                  # (Cin, Lw)
            part = jnp.dot(w_ref[kidx], x_k,
                           preferred_element_type=jnp.float32)  # (tc, Lw) f32
            z = part if z is None else z + part

    # Per-channel instance-norm statistics over the valid columns only
    # ((i % Wp) < W); garbage columns contribute 0 via the mask.
    mask = mask_ref[...]                                         # (1, Lw) f32
    zm = z * mask
    s = jnp.sum(zm, axis=-1, keepdims=True)                      # (tc, 1)
    ssq = jnp.sum(zm * zm, axis=-1, keepdims=True)               # (tc, 1)
    mean = s * inv_count
    var = jnp.maximum(ssq * inv_count - mean * mean, 0.0)        # biased variance
    scale = g_ref[...] * lax.rsqrt(var + EPS)                    # (tc, 1)
    shift = b_ref[...] - mean * scale        # conv bias cancels under InstanceNorm

    out = z * scale + shift                  # one FMA per element
    if apply_relu:
        out = jnp.maximum(out, 0.0)
    if add_residual:
        out = out + res_ref[0]
    o_ref[0] = out.astype(o_ref.dtype)


# ---------------------------------------------------------------------------
# One ConvLayer (reflect-pad -> conv -> InstanceNorm affine) + optional ReLU /
# residual add, as a single pallas_call.
# ---------------------------------------------------------------------------
def _conv_instance_norm(x, weight, gamma, beta, *, kernel_size, apply_relu=False,
                        residual=None, mxu_dtype=jnp.bfloat16,
                        out_dtype=jnp.float32, cout_tile=64):
    N, Cin, H, W = x.shape
    Cout = weight.shape[0]
    K = kernel_size
    pad = K // 2
    Hp, Wp = H + 2 * pad, W + 2 * pad
    Lw = H * Wp                                   # "wide" output length per image
    Lf = _round_up(Hp * Wp + (K - 1), 128)        # flat padded-input length (+ tail)

    # Reflection pad, flatten padded spatial dims (contiguous, lane-dense), small
    # zero tail so every shifted slice stays in bounds.  ~1x input bytes total.
    xp = jnp.pad(x, ((0, 0), (0, 0), (pad, pad), (pad, pad)), mode="reflect")
    xf = xp.reshape(N, Cin, Hp * Wp)
    xf = jnp.pad(xf, ((0, 0), (0, 0), (0, Lf - Hp * Wp))).astype(mxu_dtype)

    # One (Cout, Cin) matrix per conv tap -- no in-kernel transpose needed.
    w_taps = jnp.transpose(weight.reshape(Cout, Cin, K * K), (2, 0, 1)).astype(mxu_dtype)

    g_col = gamma.reshape(Cout, 1).astype(jnp.float32)
    b_col = beta.reshape(Cout, 1).astype(jnp.float32)

    # Valid-column mask: flat index i is a real output pixel iff (i % Wp) < W.
    mask = ((jnp.arange(Lw) % Wp) < W).astype(jnp.float32).reshape(1, Lw)

    # Channel-block tiling: instance-norm channels are independent, so Cout can be
    # split across grid steps (megacore parallelism even at N == 1, bounded VMEM).
    tc = cout_tile if (Cout % cout_tile == 0) else Cout
    n_cb = Cout // tc

    add_residual = residual is not None
    inputs = [xf, w_taps, g_col, b_col, mask]
    in_specs = [
        pl.BlockSpec((1, Cin, Lf), lambda n, c: (n, 0, 0)),      # resident across c
        pl.BlockSpec((K * K, tc, Cin), lambda n, c: (0, c, 0)),
        pl.BlockSpec((tc, 1), lambda n, c: (c, 0)),
        pl.BlockSpec((tc, 1), lambda n, c: (c, 0)),
        pl.BlockSpec((1, Lw), lambda n, c: (0, 0)),
    ]
    if add_residual:
        # Residual laid out on the same "wide" grid (zero in the garbage columns).
        res_wide = jnp.pad(residual, ((0, 0), (0, 0), (0, 0), (0, Wp - W)))
        res_wide = res_wide.reshape(N, Cout, Lw).astype(jnp.float32)
        inputs.append(res_wide)
        in_specs.append(pl.BlockSpec((1, tc, Lw), lambda n, c: (n, c, 0)))

    kernel = functools.partial(
        _fused_conv_in_kernel, K=K, Wp=Wp, Lw=Lw,
        inv_count=1.0 / float(H * W),
        apply_relu=apply_relu, add_residual=add_residual)

    out_wide = pl.pallas_call(
        kernel,
        out_shape=jax.ShapeDtypeStruct((N, Cout, Lw), out_dtype),
        grid_spec=pltpu.PrefetchScalarGridSpec(
            num_scalar_prefetch=0,
            grid=(N, n_cb),
            in_specs=in_specs,
            out_specs=pl.BlockSpec((1, tc, Lw), lambda n, c: (n, c, 0)),
        ),
        compiler_params=pltpu.CompilerParams(
            dimension_semantics=("parallel", "parallel"),
            vmem_limit_bytes=48 * 1024 * 1024,
        ),
    )(*inputs)

    # (N, Cout, H*Wp) -> NCHW: drop the (Wp - W) garbage columns per row.
    return out_wide.reshape(N, Cout, H, Wp)[:, :, :, :W]


@functools.partial(jax.jit, static_argnames=("kernel_size", "mxu_dtype"))
def residual_layer_forward(x, w1, b1, g1, beta1, w2, b2, g2, beta2, *,
                           kernel_size=3, mxu_dtype=jnp.bfloat16):
    """ResidualLayer forward: x + conv2(relu(conv1(x))), each conv = pad->conv->IN."""
    del b1, b2  # conv bias cancels exactly under InstanceNorm (mean subtraction)
    # conv1 + IN + ReLU; intermediate carried in mxu_dtype (bf16 stream by default).
    h = _conv_instance_norm(x, w1, g1, beta1, kernel_size=kernel_size,
                            apply_relu=True, mxu_dtype=mxu_dtype,
                            out_dtype=mxu_dtype)
    # conv2 + IN + residual add; final output in f32.
    out = _conv_instance_norm(h, w2, g2, beta2, kernel_size=kernel_size,
                              residual=x, mxu_dtype=mxu_dtype,
                              out_dtype=jnp.float32)
    return out


# ---------------------------------------------------------------------------
# Pure-JAX reference (mirrors the PyTorch module) for correctness checking
# ---------------------------------------------------------------------------
def _conv_layer_ref(x, weight, bias, gamma, beta, kernel_size, stride):
    K = kernel_size
    pad = K // 2
    xp = jnp.pad(x, ((0, 0), (0, 0), (pad, pad), (pad, pad)), mode="reflect")
    y = lax.conv_general_dilated(
        xp, weight, window_strides=(stride, stride), padding="VALID",
        dimension_numbers=("NCHW", "OIHW", "NCHW"),
    ) + bias.reshape(1, -1, 1, 1)
    mean = jnp.mean(y, axis=(2, 3), keepdims=True)
    var = jnp.mean((y - mean) ** 2, axis=(2, 3), keepdims=True)
    y_n = (y - mean) / jnp.sqrt(var + EPS)
    return y_n * gamma.reshape(1, -1, 1, 1) + beta.reshape(1, -1, 1, 1)


def _residual_layer_ref(x, w1, b1, g1, beta1, w2, b2, g2, beta2, kernel_size):
    h = jnp.maximum(_conv_layer_ref(x, w1, b1, g1, beta1, kernel_size, 1), 0.0)
    return _conv_layer_ref(h, w2, b2, g2, beta2, kernel_size, 1) + x


if __name__ == "__main__":
    # Small shapes consistent with ResidualLayer(channels=C, kernel_size=3).
    N, C, H, W = 2, 8, 16, 16
    K = 3

    key = jax.random.PRNGKey(0)
    ks = jax.random.split(key, 9)
    x = jax.random.normal(ks[0], (N, C, H, W), dtype=jnp.float32)

    fan_in = C * K * K
    bound = 1.0 / np.sqrt(fan_in)
    w1 = jax.random.uniform(ks[1], (C, C, K, K), jnp.float32, -bound, bound)
    b1 = jax.random.uniform(ks[2], (C,), jnp.float32, -bound, bound)
    w2 = jax.random.uniform(ks[3], (C, C, K, K), jnp.float32, -bound, bound)
    b2 = jax.random.uniform(ks[4], (C,), jnp.float32, -bound, bound)
    # Affine InstanceNorm params perturbed from the 1/0 defaults so the folded
    # scale/shift path is actually exercised.
    g1 = 1.0 + 0.1 * jax.random.normal(ks[5], (C,), jnp.float32)
    beta1 = 0.1 * jax.random.normal(ks[6], (C,), jnp.float32)
    g2 = 1.0 + 0.1 * jax.random.normal(ks[7], (C,), jnp.float32)
    beta2 = 0.1 * jax.random.normal(ks[8], (C,), jnp.float32)

    ref = _residual_layer_ref(x, w1, b1, g1, beta1, w2, b2, g2, beta2, K)

    # f32 MXU-operand path: tight correctness check.
    out_f32 = residual_layer_forward(x, w1, b1, g1, beta1, w2, b2, g2, beta2,
                                     kernel_size=K, mxu_dtype=jnp.float32)
    out_f32 = jax.block_until_ready(out_f32)
    assert out_f32.shape == (N, C, H, W)
    np.testing.assert_allclose(np.asarray(out_f32), np.asarray(ref),
                               rtol=5e-4, atol=5e-4)

    # Default production path: bf16 operand streams + bf16 conv1->conv2
    # intermediate (f32 accumulation everywhere) -- looser tolerance.
    out_bf16 = residual_layer_forward(x, w1, b1, g1, beta1, w2, b2, g2, beta2,
                                      kernel_size=K)
    out_bf16 = jax.block_until_ready(out_bf16)
    np.testing.assert_allclose(np.asarray(out_bf16), np.asarray(ref),
                               rtol=1e-1, atol=1e-1)

    print("KERNEL_OK")
</pallas_src>

<mosaic_0001>
module attributes {stable_mosaic.version = 11 : i64} {
  func.func @_fused_conv_in_kernel(%arg0: i32, %arg1: i32, %arg2: memref<1x8x384xf32, #tpu.memory_space<vmem>>, %arg3: memref<9x8x8xf32, #tpu.memory_space<vmem>>, %arg4: memref<8x1xf32, #tpu.memory_space<vmem>>, %arg5: memref<8x1xf32, #tpu.memory_space<vmem>>, %arg6: memref<1x288xf32, #tpu.memory_space<vmem>>, %arg7: memref<1x8x288xf32, #tpu.memory_space<vmem>>) attributes {dimension_semantics = [#tpu.dimension_semantics<parallel>, #tpu.dimension_semantics<parallel>], iteration_bounds = array<i64: 2, 1>, scalar_prefetch = 0 : i64, scratch_operands = 0 : i64, tpu.core_type = #tpu.core_type<tc>, window_params = [{transform_indices = @transform_0, window_bounds = array<i64: 1, 8, 384>}, {transform_indices = @transform_1, window_bounds = array<i64: 9, 8, 8>}, {transform_indices = @transform_2, window_bounds = array<i64: 8, 1>}, {transform_indices = @transform_3, window_bounds = array<i64: 8, 1>}, {pipeline_mode = #tpu.pipeline_mode<synchronous>, transform_indices = @transform_4, window_bounds = array<i64: 1, 288>}, {transform_indices = @transform_5, window_bounds = array<i64: 1, 8, 288>}]} {
    %c0 = arith.constant 0 : index
    %c0_0 = arith.constant 0 : index
    %c0_1 = arith.constant 0 : index
    %0 = vector.load %arg2[%c0, %c0_0, %c0_1] : memref<1x8x384xf32, #tpu.memory_space<vmem>>, vector<1x8x288xf32>
    %1 = vector.shape_cast %0 : vector<1x8x288xf32> to vector<8x288xf32>
    %c0_2 = arith.constant 0 : index
    %c0_3 = arith.constant 0 : index
    %c0_4 = arith.constant 0 : index
    %2 = vector.load %arg3[%c0_2, %c0_3, %c0_4] : memref<9x8x8xf32, #tpu.memory_space<vmem>>, vector<1x8x8xf32>
    %3 = vector.shape_cast %2 : vector<1x8x8xf32> to vector<8x8xf32>
    %cst = arith.constant dense<0.000000e+00> : vector<8x288xf32>
    %4 = tpu.matmul %3, %1, %cst {dimension_numbers = #tpu.dot_dimension_numbers<[1], [0], [0], [1], [0, 0, 1, 1], [], []>} : vector<8x8xf32>, vector<8x288xf32>, vector<8x288xf32> -> vector<8x288xf32>
    %c0_5 = arith.constant 0 : index
    %c0_6 = arith.constant 0 : index
    %c1 = arith.constant 1 : index
    %5 = vector.load %arg2[%c0_5, %c0_6, %c1] : memref<1x8x384xf32, #tpu.memory_space<vmem>>, vector<1x8x288xf32>
    %6 = vector.shape_cast %5 : vector<1x8x288xf32> to vector<8x288xf32>
    %c1_7 = arith.constant 1 : index
    %c0_8 = arith.constant 0 : index
    %c0_9 = arith.constant 0 : index
    %7 = vector.load %arg3[%c1_7, %c0_8, %c0_9] : memref<9x8x8xf32, #tpu.memory_space<vmem>>, vector<1x8x8xf32>
    %8 = vector.shape_cast %7 : vector<1x8x8xf32> to vector<8x8xf32>
    %cst_10 = arith.constant dense<0.000000e+00> : vector<8x288xf32>
    %9 = tpu.matmul %8, %6, %cst_10 {dimension_numbers = #tpu.dot_dimension_numbers<[1], [0], [0], [1], [0, 0, 1, 1], [], []>} : vector<8x8xf32>, vector<8x288xf32>, vector<8x288xf32> -> vector<8x288xf32>
    %10 = arith.addf %4, %9 : vector<8x288xf32>
    %c0_11 = arith.constant 0 : index
    %c0_12 = arith.constant 0 : index
    %c2 = arith.constant 2 : index
    %11 = vector.load %arg2[%c0_11, %c0_12, %c2] : memref<1x8x384xf32, #tpu.memory_space<vmem>>, vector<1x8x288xf32>
    %12 = vector.shape_cast %11 : vector<1x8x288xf32> to vector<8x288xf32>
    %c2_13 = arith.constant 2 : index
    %c0_14 = arith.constant 0 : index
    %c0_15 = arith.constant 0 : index
    %13 = vector.load %arg3[%c2_13, %c0_14, %c0_15] : memref<9x8x8xf32, #tpu.memory_space<vmem>>, vector<1x8x8xf32>
    %14 = vector.shape_cast %13 : vector<1x8x8xf32> to vector<8x8xf32>
    %cst_16 = arith.constant dense<0.000000e+00> : vector<8x288xf32>
    %15 = tpu.matmul %14, %12, %cst_16 {dimension_numbers = #tpu.dot_dimension_numbers<[1], [0], [0], [1], [0, 0, 1, 1], [], []>} : vector<8x8xf32>, vector<8x288xf32>, vector<8x288xf32> -> vector<8x288xf32>
    %16 = arith.addf %10, %15 : vector<8x288xf32>
    %c0_17 = arith.constant 0 : index
    %c0_18 = arith.constant 0 : index
    %c18 = arith.constant 18 : index
    %17 = vector.load %arg2[%c0_17, %c0_18, %c18] : memref<1x8x384xf32, #tpu.memory_space<vmem>>, vector<1x8x288xf32>
    %18 = vector.shape_cast %17 : vector<1x8x288xf32> to vector<8x288xf32>
    %c3 = arith.constant 3 : index
    %c0_19 = arith.constant 0 : index
    %c0_20 = arith.constant 0 : index
    %19 = vector.load %arg3[%c3, %c0_19, %c0_20] : memref<9x8x8xf32, #tpu.memory_space<vmem>>, vector<1x8x8xf32>
    %20 = vector.shape_cast %19 : vector<1x8x8xf32> to vector<8x8xf32>
    %cst_21 = arith.constant dense<0.000000e+00> : vector<8x288xf32>
    %21 = tpu.matmul %20, %18, %cst_21 {dimension_numbers = #tpu.dot_dimension_numbers<[1], [0], [0], [1], [0, 0, 1, 1], [], []>} : vector<8x8xf32>, vector<8x288xf32>, vector<8x288xf32> -> vector<8x288xf32>
    %22 = arith.addf %16, %21 : vector<8x288xf32>
    %c0_22 = arith.constant 0 : index
    %c0_23 = arith.constant 0 : index
    %c19 = arith.constant 19 : index
    %23 = vector.load %arg2[%c0_22, %c0_23, %c19] : memref<1x8x384xf32, #tpu.memory_space<vmem>>, vector<1x8x288xf32>
    %24 = vector.shape_cast %23 : vector<1x8x288xf32> to vector<8x288xf32>
    %c4 = arith.constant 4 : index
    %c0_24 = arith.constant 0 : index
    %c0_25 = arith.constant 0 : index
    %25 = vector.load %arg3[%c4, %c0_24, %c0_25] : memref<9x8x8xf32, #tpu.memory_space<vmem>>, vector<1x8x8xf32>
    %26 = vector.shape_cast %25 : vector<1x8x8xf32> to vector<8x8xf32>
    %cst_26 = arith.constant dense<0.000000e+00> : vector<8x288xf32>
    %27 = tpu.matmul %26, %24, %cst_26 {dimension_numbers = #tpu.dot_dimension_numbers<[1], [0], [0], [1], [0, 0, 1, 1], [], []>} : vector<8x8xf32>, vector<8x288xf32>, vector<8x288xf32> -> vector<8x288xf32>
    %28 = arith.addf %22, %27 : vector<8x288xf32>
    %c0_27 = arith.constant 0 : index
    %c0_28 = arith.constant 0 : index
    %c20 = arith.constant 20 : index
    %29 = vector.load %arg2[%c0_27, %c0_28, %c20] : memref<1x8x384xf32, #tpu.memory_space<vmem>>, vector<1x8x288xf32>
    %30 = vector.shape_cast %29 : vector<1x8x288xf32> to vector<8x288xf32>
    %c5 = arith.constant 5 : index
    %c0_29 = arith.constant 0 : index
    %c0_30 = arith.constant 0 : index
    %31 = vector.load %arg3[%c5, %c0_29, %c0_30] : memref<9x8x8xf32, #tpu.memory_space<vmem>>, vector<1x8x8xf32>
    %32 = vector.shape_cast %31 : vector<1x8x8xf32> to vector<8x8xf32>
    %cst_31 = arith.constant dense<0.000000e+00> : vector<8x288xf32>
    %33 = tpu.matmul %32, %30, %cst_31 {dimension_numbers = #tpu.dot_dimension_numbers<[1], [0], [0], [1], [0, 0, 1, 1], [], []>} : vector<8x8xf32>, vector<8x288xf32>, vector<8x288xf32> -> vector<8x288xf32>
    %34 = arith.addf %28, %33 : vector<8x288xf32>
    %c0_32 = arith.constant 0 : index
    %c0_33 = arith.constant 0 : index
    %c36 = arith.constant 36 : index
    %35 = vector.load %arg2[%c0_32, %c0_33, %c36] : memref<1x8x384xf32, #tpu.memory_space<vmem>>, vector<1x8x288xf32>
    %36 = vector.shape_cast %35 : vector<1x8x288xf32> to vector<8x288xf32>
    %c6 = arith.constant 6 : index
    %c0_34 = arith.constant 0 : index
    %c0_35 = arith.constant 0 : index
    %37 = vector.load %arg3[%c6, %c0_34, %c0_35] : memref<9x8x8xf32, #tpu.memory_space<vmem>>, vector<1x8x8xf32>
    %38 = vector.shape_cast %37 : vector<1x8x8xf32> to vector<8x8xf32>
    %cst_36 = arith.constant dense<0.000000e+00> : vector<8x288xf32>
    %39 = tpu.matmul %38, %36, %cst_36 {dimension_numbers = #tpu.dot_dimension_numbers<[1], [0], [0], [1], [0, 0, 1, 1], [], []>} : vector<8x8xf32>, vector<8x288xf32>, vector<8x288xf32> -> vector<8x288xf32>
    %40 = arith.addf %34, %39 : vector<8x288xf32>
    %c0_37 = arith.constant 0 : index
    %c0_38 = arith.constant 0 : index
    %c37 = arith.constant 37 : index
    %41 = vector.load %arg2[%c0_37, %c0_38, %c37] : memref<1x8x384xf32, #tpu.memory_space<vmem>>, vector<1x8x288xf32>
    %42 = vector.shape_cast %41 : vector<1x8x288xf32> to vector<8x288xf32>
    %c7 = arith.constant 7 : index
    %c0_39 = arith.constant 0 : index
    %c0_40 = arith.constant 0 : index
    %43 = vector.load %arg3[%c7, %c0_39, %c0_40] : memref<9x8x8xf32, #tpu.memory_space<vmem>>, vector<1x8x8xf32>
    %44 = vector.shape_cast %43 : vector<1x8x8xf32> to vector<8x8xf32>
    %cst_41 = arith.constant dense<0.000000e+00> : vector<8x288xf32>
    %45 = tpu.matmul %44, %42, %cst_41 {dimension_numbers = #tpu.dot_dimension_numbers<[1], [0], [0], [1], [0, 0, 1, 1], [], []>} : vector<8x8xf32>, vector<8x288xf32>, vector<8x288xf32> -> vector<8x288xf32>
    %46 = arith.addf %40, %45 : vector<8x288xf32>
    %c0_42 = arith.constant 0 : index
    %c0_43 = arith.constant 0 : index
    %c38 = arith.constant 38 : index
    %47 = vector.load %arg2[%c0_42, %c0_43, %c38] : memref<1x8x384xf32, #tpu.memory_space<vmem>>, vector<1x8x288xf32>
    %48 = vector.shape_cast %47 : vector<1x8x288xf32> to vector<8x288xf32>
    %c8 = arith.constant 8 : index
    %c0_44 = arith.constant 0 : index
    %c0_45 = arith.constant 0 : index
    %49 = vector.load %arg3[%c8, %c0_44, %c0_45] : memref<9x8x8xf32, #tpu.memory_space<vmem>>, vector<1x8x8xf32>
    %50 = vector.shape_cast %49 : vector<1x8x8xf32> to vector<8x8xf32>
    %cst_46 = arith.constant dense<0.000000e+00> : vector<8x288xf32>
    %51 = tpu.matmul %50, %48, %cst_46 {dimension_numbers = #tpu.dot_dimension_numbers<[1], [0], [0], [1], [0, 0, 1, 1], [], []>} : vector<8x8xf32>, vector<8x288xf32>, vector<8x288xf32> -> vector<8x288xf32>
    %52 = arith.addf %46, %51 : vector<8x288xf32>
    %c0_47 = arith.constant 0 : index
    %c0_48 = arith.constant 0 : index
    %53 = vector.load %arg6[%c0_47, %c0_48] : memref<1x288xf32, #tpu.memory_space<vmem>>, vector<1x288xf32>
    %54 = vector.broadcast %53 : vector<1x288xf32> to vector<8x288xf32>
    %55 = arith.mulf %52, %54 : vector<8x288xf32>
    %cst_49 = arith.constant dense<0.000000e+00> : vector<8xf32>
    %56 = vector.multi_reduction <add>, %55, %cst_49 [1] : vector<8x288xf32> to vector<8xf32>
    %57 = vector.shape_cast %56 : vector<8xf32> to vector<8x1xf32>
    %58 = arith.mulf %55, %55 : vector<8x288xf32>
    %cst_50 = arith.constant dense<0.000000e+00> : vector<8xf32>
    %59 = vector.multi_reduction <add>, %58, %cst_50 [1] : vector<8x288xf32> to vector<8xf32>
    %60 = vector.shape_cast %59 : vector<8xf32> to vector<8x1xf32>
    %cst_51 = arith.constant 3.906250e-03 : f32
    %61 = vector.broadcast %cst_51 : f32 to vector<8x1xf32>
    %62 = arith.mulf %57, %61 : vector<8x1xf32>
    %cst_52 = arith.constant 3.906250e-03 : f32
    %63 = vector.broadcast %cst_52 : f32 to vector<8x1xf32>
    %64 = arith.mulf %60, %63 : vector<8x1xf32>
    %65 = arith.mulf %62, %62 : vector<8x1xf32>
    %66 = arith.subf %64, %65 : vector<8x1xf32>
    %cst_53 = arith.constant 0.000000e+00 : f32
    %67 = vector.broadcast %cst_53 : f32 to vector<8x1xf32>
    %68 = arith.maximumf %66, %67 : vector<8x1xf32>
    %c0_54 = arith.constant 0 : index
    %c0_55 = arith.constant 0 : index
    %69 = vector.load %arg4[%c0_54, %c0_55] : memref<8x1xf32, #tpu.memory_space<vmem>>, vector<8x1xf32>
    %cst_56 = arith.constant 9.99999974E-6 : f32
    %70 = vector.broadcast %cst_56 : f32 to vector<8x1xf32>
    %71 = arith.addf %68, %70 : vector<8x1xf32>
    %72 = math.rsqrt %71 : vector<8x1xf32>
    %73 = arith.mulf %69, %72 : vector<8x1xf32>
    %c0_57 = arith.constant 0 : index
    %c0_58 = arith.constant 0 : index
    %74 = vector.load %arg5[%c0_57, %c0_58] : memref<8x1xf32, #tpu.memory_space<vmem>>, vector<8x1xf32>
    %75 = arith.mulf %62, %73 : vector<8x1xf32>
    %76 = arith.subf %74, %75 : vector<8x1xf32>
    %77 = vector.broadcast %73 : vector<8x1xf32> to vector<8x288xf32>
    %78 = arith.mulf %52, %77 : vector<8x288xf32>
    %79 = vector.broadcast %76 : vector<8x1xf32> to vector<8x288xf32>
    %80 = arith.addf %78, %79 : vector<8x288xf32>
    %cst_59 = arith.constant 0.000000e+00 : f32
    %81 = vector.broadcast %cst_59 : f32 to vector<8x288xf32>
    %82 = arith.maximumf %80, %81 : vector<8x288xf32>
    %c0_60 = arith.constant 0 : index
    %c0_61 = arith.constant 0 : index
    %c0_62 = arith.constant 0 : index
    %83 = vector.load %arg7[%c0_60, %c0_61, %c0_62] : memref<1x8x288xf32, #tpu.memory_space<vmem>>, vector<1x8x288xf32>
    %84 = vector.shape_cast %83 : vector<1x8x288xf32> to vector<8x288xf32>
    %85 = vector.shape_cast %82 : vector<8x288xf32> to vector<1x8x288xf32>
    tpu.vector_store %arg7[%c0_60, %c0_61, %c0_62], %85 {strides = array<i32>} : memref<1x8x288xf32, #tpu.memory_space<vmem>>, vector<1x8x288xf32>,
    return
  }
  func.func @transform_0(%arg0: i32, %arg1: i32) -> (i32, i32, i32) {
    %c0_i32 = arith.constant 0 : i32
    %c0_i32_0 = arith.constant 0 : i32
    %c0_i32_1 = arith.constant 0 : i32
    return %arg0, %c0_i32, %c0_i32_0 : i32, i32, i32
  }
  func.func @transform_1(%arg0: i32, %arg1: i32) -> (i32, i32, i32) {
    %c0_i32 = arith.constant 0 : i32
    %c0_i32_0 = arith.constant 0 : i32
    %c0_i32_1 = arith.constant 0 : i32
    return %c0_i32, %arg1, %c0_i32_0 : i32, i32, i32
  }
  func.func @transform_2(%arg0: i32, %arg1: i32) -> (i32, i32) {
    %c0_i32 = arith.constant 0 : i32
    %c0_i32_0 = arith.constant 0 : i32
    return %arg1, %c0_i32 : i32, i32
  }
  func.func @transform_3(%arg0: i32, %arg1: i32) -> (i32, i32) {
    %c0_i32 = arith.constant 0 : i32
    %c0_i32_0 = arith.constant 0 : i32
    return %arg1, %c0_i32 : i32, i32
  }
  func.func @transform_4(%arg0: i32, %arg1: i32) -> (i32, i32) {
    %c0_i32 = arith.constant 0 : i32
    %c0_i32_0 = arith.constant 0 : i32
    %c0_i32_1 = arith.constant 0 : i32
    return %c0_i32, %c0_i32_0 : i32, i32
  }
  func.func @transform_5(%arg0: i32, %arg1: i32) -> (i32, i32, i32) {
    %c0_i32 = arith.constant 0 : i32
    %c0_i32_0 = arith.constant 0 : i32
    return %arg0, %arg1, %c0_i32 : i32, i32, i32
  }
}

module attributes {stable_mosaic.version = 11 : i64} {
  func.func @_fused_conv_in_kernel(%arg0: i32, %arg1: i32, %arg2: memref<1x8x384xf32, #tpu.memory_space<vmem>>, %arg3: memref<9x8x8xf32, #tpu.memory_space<vmem>>, %arg4: memref<8x1xf32, #tpu.memory_space<vmem>>, %arg5: memref<8x1xf32, #tpu.memory_space<vmem>>, %arg6: memref<1x288xf32, #tpu.memory_space<vmem>>, %arg7: memref<1x8x288xf32, #tpu.memory_space<vmem>>, %arg8: memref<1x8x288xf32, #tpu.memory_space<vmem>>) attributes {dimension_semantics = [#tpu.dimension_semantics<parallel>, #tpu.dimension_semantics<parallel>], iteration_bounds = array<i64: 2, 1>, scalar_prefetch = 0 : i64, scratch_operands = 0 : i64, tpu.core_type = #tpu.core_type<tc>, window_params = [{transform_indices = @transform_0, window_bounds = array<i64: 1, 8, 384>}, {transform_indices = @transform_1, window_bounds = array<i64: 9, 8, 8>}, {transform_indices = @transform_2, window_bounds = array<i64: 8, 1>}, {transform_indices = @transform_3, window_bounds = array<i64: 8, 1>}, {pipeline_mode = #tpu.pipeline_mode<synchronous>, transform_indices = @transform_4, window_bounds = array<i64: 1, 288>}, {transform_indices = @transform_5, window_bounds = array<i64: 1, 8, 288>}, {transform_indices = @transform_6, window_bounds = array<i64: 1, 8, 288>}]} {
    %c0 = arith.constant 0 : index
    %c0_0 = arith.constant 0 : index
    %c0_1 = arith.constant 0 : index
    %0 = vector.load %arg2[%c0, %c0_0, %c0_1] : memref<1x8x384xf32, #tpu.memory_space<vmem>>, vector<1x8x288xf32>
    %1 = vector.shape_cast %0 : vector<1x8x288xf32> to vector<8x288xf32>
    %c0_2 = arith.constant 0 : index
    %c0_3 = arith.constant 0 : index
    %c0_4 = arith.constant 0 : index
    %2 = vector.load %arg3[%c0_2, %c0_3, %c0_4] : memref<9x8x8xf32, #tpu.memory_space<vmem>>, vector<1x8x8xf32>
    %3 = vector.shape_cast %2 : vector<1x8x8xf32> to vector<8x8xf32>
    %cst = arith.constant dense<0.000000e+00> : vector<8x288xf32>
    %4 = tpu.matmul %3, %1, %cst {dimension_numbers = #tpu.dot_dimension_numbers<[1], [0], [0], [1], [0, 0, 1, 1], [], []>} : vector<8x8xf32>, vector<8x288xf32>, vector<8x288xf32> -> vector<8x288xf32>
    %c0_5 = arith.constant 0 : index
    %c0_6 = arith.constant 0 : index
    %c1 = arith.constant 1 : index
    %5 = vector.load %arg2[%c0_5, %c0_6, %c1] : memref<1x8x384xf32, #tpu.memory_space<vmem>>, vector<1x8x288xf32>
    %6 = vector.shape_cast %5 : vector<1x8x288xf32> to vector<8x288xf32>
    %c1_7 = arith.constant 1 : index
    %c0_8 = arith.constant 0 : index
    %c0_9 = arith.constant 0 : index
    %7 = vector.load %arg3[%c1_7, %c0_8, %c0_9] : memref<9x8x8xf32, #tpu.memory_space<vmem>>, vector<1x8x8xf32>
    %8 = vector.shape_cast %7 : vector<1x8x8xf32> to vector<8x8xf32>
    %cst_10 = arith.constant dense<0.000000e+00> : vector<8x288xf32>
    %9 = tpu.matmul %8, %6, %cst_10 {dimension_numbers = #tpu.dot_dimension_numbers<[1], [0], [0], [1], [0, 0, 1, 1], [], []>} : vector<8x8xf32>, vector<8x288xf32>, vector<8x288xf32> -> vector<8x288xf32>
    %10 = arith.addf %4, %9 : vector<8x288xf32>
    %c0_11 = arith.constant 0 : index
    %c0_12 = arith.constant 0 : index
    %c2 = arith.constant 2 : index
    %11 = vector.load %arg2[%c0_11, %c0_12, %c2] : memref<1x8x384xf32, #tpu.memory_space<vmem>>, vector<1x8x288xf32>
    %12 = vector.shape_cast %11 : vector<1x8x288xf32> to vector<8x288xf32>
    %c2_13 = arith.constant 2 : index
    %c0_14 = arith.constant 0 : index
    %c0_15 = arith.constant 0 : index
    %13 = vector.load %arg3[%c2_13, %c0_14, %c0_15] : memref<9x8x8xf32, #tpu.memory_space<vmem>>, vector<1x8x8xf32>
    %14 = vector.shape_cast %13 : vector<1x8x8xf32> to vector<8x8xf32>
    %cst_16 = arith.constant dense<0.000000e+00> : vector<8x288xf32>
    %15 = tpu.matmul %14, %12, %cst_16 {dimension_numbers = #tpu.dot_dimension_numbers<[1], [0], [0], [1], [0, 0, 1, 1], [], []>} : vector<8x8xf32>, vector<8x288xf32>, vector<8x288xf32> -> vector<8x288xf32>
    %16 = arith.addf %10, %15 : vector<8x288xf32>
    %c0_17 = arith.constant 0 : index
    %c0_18 = arith.constant 0 : index
    %c18 = arith.constant 18 : index
    %17 = vector.load %arg2[%c0_17, %c0_18, %c18] : memref<1x8x384xf32, #tpu.memory_space<vmem>>, vector<1x8x288xf32>
    %18 = vector.shape_cast %17 : vector<1x8x288xf32> to vector<8x288xf32>
    %c3 = arith.constant 3 : index
    %c0_19 = arith.constant 0 : index
    %c0_20 = arith.constant 0 : index
    %19 = vector.load %arg3[%c3, %c0_19, %c0_20] : memref<9x8x8xf32, #tpu.memory_space<vmem>>, vector<1x8x8xf32>
    %20 = vector.shape_cast %19 : vector<1x8x8xf32> to vector<8x8xf32>
    %cst_21 = arith.constant dense<0.000000e+00> : vector<8x288xf32>
    %21 = tpu.matmul %20, %18, %cst_21 {dimension_numbers = #tpu.dot_dimension_numbers<[1], [0], [0], [1], [0, 0, 1, 1], [], []>} : vector<8x8xf32>, vector<8x288xf32>, vector<8x288xf32> -> vector<8x288xf32>
    %22 = arith.addf %16, %21 : vector<8x288xf32>
    %c0_22 = arith.constant 0 : index
    %c0_23 = arith.constant 0 : index
    %c19 = arith.constant 19 : index
    %23 = vector.load %arg2[%c0_22, %c0_23, %c19] : memref<1x8x384xf32, #tpu.memory_space<vmem>>, vector<1x8x288xf32>
    %24 = vector.shape_cast %23 : vector<1x8x288xf32> to vector<8x288xf32>
    %c4 = arith.constant 4 : index
    %c0_24 = arith.constant 0 : index
    %c0_25 = arith.constant 0 : index
    %25 = vector.load %arg3[%c4, %c0_24, %c0_25] : memref<9x8x8xf32, #tpu.memory_space<vmem>>, vector<1x8x8xf32>
    %26 = vector.shape_cast %25 : vector<1x8x8xf32> to vector<8x8xf32>
    %cst_26 = arith.constant dense<0.000000e+00> : vector<8x288xf32>
    %27 = tpu.matmul %26, %24, %cst_26 {dimension_numbers = #tpu.dot_dimension_numbers<[1], [0], [0], [1], [0, 0, 1, 1], [], []>} : vector<8x8xf32>, vector<8x288xf32>, vector<8x288xf32> -> vector<8x288xf32>
    %28 = arith.addf %22, %27 : vector<8x288xf32>
    %c0_27 = arith.constant 0 : index
    %c0_28 = arith.constant 0 : index
    %c20 = arith.constant 20 : index
    %29 = vector.load %arg2[%c0_27, %c0_28, %c20] : memref<1x8x384xf32, #tpu.memory_space<vmem>>, vector<1x8x288xf32>
    %30 = vector.shape_cast %29 : vector<1x8x288xf32> to vector<8x288xf32>
    %c5 = arith.constant 5 : index
    %c0_29 = arith.constant 0 : index
    %c0_30 = arith.constant 0 : index
    %31 = vector.load %arg3[%c5, %c0_29, %c0_30] : memref<9x8x8xf32, #tpu.memory_space<vmem>>, vector<1x8x8xf32>
    %32 = vector.shape_cast %31 : vector<1x8x8xf32> to vector<8x8xf32>
    %cst_31 = arith.constant dense<0.000000e+00> : vector<8x288xf32>
    %33 = tpu.matmul %32, %30, %cst_31 {dimension_numbers = #tpu.dot_dimension_numbers<[1], [0], [0], [1], [0, 0, 1, 1], [], []>} : vector<8x8xf32>, vector<8x288xf32>, vector<8x288xf32> -> vector<8x288xf32>
    %34 = arith.addf %28, %33 : vector<8x288xf32>
    %c0_32 = arith.constant 0 : index
    %c0_33 = arith.constant 0 : index
    %c36 = arith.constant 36 : index
    %35 = vector.load %arg2[%c0_32, %c0_33, %c36] : memref<1x8x384xf32, #tpu.memory_space<vmem>>, vector<1x8x288xf32>
    %36 = vector.shape_cast %35 : vector<1x8x288xf32> to vector<8x288xf32>
    %c6 = arith.constant 6 : index
    %c0_34 = arith.constant 0 : index
    %c0_35 = arith.constant 0 : index
    %37 = vector.load %arg3[%c6, %c0_34, %c0_35] : memref<9x8x8xf32, #tpu.memory_space<vmem>>, vector<1x8x8xf32>
    %38 = vector.shape_cast %37 : vector<1x8x8xf32> to vector<8x8xf32>
    %cst_36 = arith.constant dense<0.000000e+00> : vector<8x288xf32>
    %39 = tpu.matmul %38, %36, %cst_36 {dimension_numbers = #tpu.dot_dimension_numbers<[1], [0], [0], [1], [0, 0, 1, 1], [], []>} : vector<8x8xf32>, vector<8x288xf32>, vector<8x288xf32> -> vector<8x288xf32>
    %40 = arith.addf %34, %39 : vector<8x288xf32>
    %c0_37 = arith.constant 0 : index
    %c0_38 = arith.constant 0 : index
    %c37 = arith.constant 37 : index
    %41 = vector.load %arg2[%c0_37, %c0_38, %c37] : memref<1x8x384xf32, #tpu.memory_space<vmem>>, vector<1x8x288xf32>
    %42 = vector.shape_cast %41 : vector<1x8x288xf32> to vector<8x288xf32>
    %c7 = arith.constant 7 : index
    %c0_39 = arith.constant 0 : index
    %c0_40 = arith.constant 0 : index
    %43 = vector.load %arg3[%c7, %c0_39, %c0_40] : memref<9x8x8xf32, #tpu.memory_space<vmem>>, vector<1x8x8xf32>
    %44 = vector.shape_cast %43 : vector<1x8x8xf32> to vector<8x8xf32>
    %cst_41 = arith.constant dense<0.000000e+00> : vector<8x288xf32>
    %45 = tpu.matmul %44, %42, %cst_41 {dimension_numbers = #tpu.dot_dimension_numbers<[1], [0], [0], [1], [0, 0, 1, 1], [], []>} : vector<8x8xf32>, vector<8x288xf32>, vector<8x288xf32> -> vector<8x288xf32>
    %46 = arith.addf %40, %45 : vector<8x288xf32>
    %c0_42 = arith.constant 0 : index
    %c0_43 = arith.constant 0 : index
    %c38 = arith.constant 38 : index
    %47 = vector.load %arg2[%c0_42, %c0_43, %c38] : memref<1x8x384xf32, #tpu.memory_space<vmem>>, vector<1x8x288xf32>
    %48 = vector.shape_cast %47 : vector<1x8x288xf32> to vector<8x288xf32>
    %c8 = arith.constant 8 : index
    %c0_44 = arith.constant 0 : index
    %c0_45 = arith.constant 0 : index
    %49 = vector.load %arg3[%c8, %c0_44, %c0_45] : memref<9x8x8xf32, #tpu.memory_space<vmem>>, vector<1x8x8xf32>
    %50 = vector.shape_cast %49 : vector<1x8x8xf32> to vector<8x8xf32>
    %cst_46 = arith.constant dense<0.000000e+00> : vector<8x288xf32>
    %51 = tpu.matmul %50, %48, %cst_46 {dimension_numbers = #tpu.dot_dimension_numbers<[1], [0], [0], [1], [0, 0, 1, 1], [], []>} : vector<8x8xf32>, vector<8x288xf32>, vector<8x288xf32> -> vector<8x288xf32>
    %52 = arith.addf %46, %51 : vector<8x288xf32>
    %c0_47 = arith.constant 0 : index
    %c0_48 = arith.constant 0 : index
    %53 = vector.load %arg6[%c0_47, %c0_48] : memref<1x288xf32, #tpu.memory_space<vmem>>, vector<1x288xf32>
    %54 = vector.broadcast %53 : vector<1x288xf32> to vector<8x288xf32>
    %55 = arith.mulf %52, %54 : vector<8x288xf32>
    %cst_49 = arith.constant dense<0.000000e+00> : vector<8xf32>
    %56 = vector.multi_reduction <add>, %55, %cst_49 [1] : vector<8x288xf32> to vector<8xf32>
    %57 = vector.shape_cast %56 : vector<8xf32> to vector<8x1xf32>
    %58 = arith.mulf %55, %55 : vector<8x288xf32>
    %cst_50 = arith.constant dense<0.000000e+00> : vector<8xf32>
    %59 = vector.multi_reduction <add>, %58, %cst_50 [1] : vector<8x288xf32> to vector<8xf32>
    %60 = vector.shape_cast %59 : vector<8xf32> to vector<8x1xf32>
    %cst_51 = arith.constant 3.906250e-03 : f32
    %61 = vector.broadcast %cst_51 : f32 to vector<8x1xf32>
    %62 = arith.mulf %57, %61 : vector<8x1xf32>
    %cst_52 = arith.constant 3.906250e-03 : f32
    %63 = vector.broadcast %cst_52 : f32 to vector<8x1xf32>
    %64 = arith.mulf %60, %63 : vector<8x1xf32>
    %65 = arith.mulf %62, %62 : vector<8x1xf32>
    %66 = arith.subf %64, %65 : vector<8x1xf32>
    %cst_53 = arith.constant 0.000000e+00 : f32
    %67 = vector.broadcast %cst_53 : f32 to vector<8x1xf32>
    %68 = arith.maximumf %66, %67 : vector<8x1xf32>
    %c0_54 = arith.constant 0 : index
    %c0_55 = arith.constant 0 : index
    %69 = vector.load %arg4[%c0_54, %c0_55] : memref<8x1xf32, #tpu.memory_space<vmem>>, vector<8x1xf32>
    %cst_56 = arith.constant 9.99999974E-6 : f32
    %70 = vector.broadcast %cst_56 : f32 to vector<8x1xf32>
    %71 = arith.addf %68, %70 : vector<8x1xf32>
    %72 = math.rsqrt %71 : vector<8x1xf32>
    %73 = arith.mulf %69, %72 : vector<8x1xf32>
    %c0_57 = arith.constant 0 : index
    %c0_58 = arith.constant 0 : index
    %74 = vector.load %arg5[%c0_57, %c0_58] : memref<8x1xf32, #tpu.memory_space<vmem>>, vector<8x1xf32>
    %75 = arith.mulf %62, %73 : vector<8x1xf32>
    %76 = arith.subf %74, %75 : vector<8x1xf32>
    %77 = vector.broadcast %73 : vector<8x1xf32> to vector<8x288xf32>
    %78 = arith.mulf %52, %77 : vector<8x288xf32>
    %79 = vector.broadcast %76 : vector<8x1xf32> to vector<8x288xf32>
    %80 = arith.addf %78, %79 : vector<8x288xf32>
    %c0_59 = arith.constant 0 : index
    %c0_60 = arith.constant 0 : index
    %c0_61 = arith.constant 0 : index
    %81 = vector.load %arg7[%c0_59, %c0_60, %c0_61] : memref<1x8x288xf32, #tpu.memory_space<vmem>>, vector<1x8x288xf32>
    %82 = vector.shape_cast %81 : vector<1x8x288xf32> to vector<8x288xf32>
    %83 = arith.addf %80, %82 : vector<8x288xf32>
    %c0_62 = arith.constant 0 : index
    %c0_63 = arith.constant 0 : index
    %c0_64 = arith.constant 0 : index
    %84 = vector.load %arg8[%c0_62, %c0_63, %c0_64] : memref<1x8x288xf32, #tpu.memory_space<vmem>>, vector<1x8x288xf32>
    %85 = vector.shape_cast %84 : vector<1x8x288xf32> to vector<8x288xf32>
    %86 = vector.shape_cast %83 : vector<8x288xf32> to vector<1x8x288xf32>
    tpu.vector_store %arg8[%c0_62, %c0_63, %c0_64], %86 {strides = array<i32>} : memref<1x8x288xf32, #tpu.memory_space<vmem>>, vector<1x8x288xf32>,
    return
  }
  func.func @transform_0(%arg0: i32, %arg1: i32) -> (i32, i32, i32) {
    %c0_i32 = arith.constant 0 : i32
    %c0_i32_0 = arith.constant 0 : i32
    %c0_i32_1 = arith.constant 0 : i32
    return %arg0, %c0_i32, %c0_i32_0 : i32, i32, i32
  }
  func.func @transform_1(%arg0: i32, %arg1: i32) -> (i32, i32, i32) {
    %c0_i32 = arith.constant 0 : i32
    %c0_i32_0 = arith.constant 0 : i32
    %c0_i32_1 = arith.constant 0 : i32
    return %c0_i32, %arg1, %c0_i32_0 : i32, i32, i32
  }
  func.func @transform_2(%arg0: i32, %arg1: i32) -> (i32, i32) {
    %c0_i32 = arith.constant 0 : i32
    %c0_i32_0 = arith.constant 0 : i32
    return %arg1, %c0_i32 : i32, i32
  }
  func.func @transform_3(%arg0: i32, %arg1: i32) -> (i32, i32) {
    %c0_i32 = arith.constant 0 : i32
    %c0_i32_0 = arith.constant 0 : i32
    return %arg1, %c0_i32 : i32, i32
  }
  func.func @transform_4(%arg0: i32, %arg1: i32) -> (i32, i32) {
    %c0_i32 = arith.constant 0 : i32
    %c0_i32_0 = arith.constant 0 : i32
    %c0_i32_1 = arith.constant 0 : i32
    return %c0_i32, %c0_i32_0 : i32, i32
  }
  func.func @transform_5(%arg0: i32, %arg1: i32) -> (i32, i32, i32) {
    %c0_i32 = arith.constant 0 : i32
    %c0_i32_0 = arith.constant 0 : i32
    return %arg0, %arg1, %c0_i32 : i32, i32, i32
  }
  func.func @transform_6(%arg0: i32, %arg1: i32) -> (i32, i32, i32) {
    %c0_i32 = arith.constant 0 : i32
    %c0_i32_0 = arith.constant 0 : i32
    return %arg0, %arg1, %c0_i32 : i32, i32, i32
  }
}

</mosaic_0001>

<llo_original>
// kernel: residual_layer_forward.2
$region0: #{residual_layer_forward.2}
  #allocation0 [shape = 'u32[]', space=smem, size = 0x4, offset = 0x4, fixed_abs, tag = 'smem constant byte address 0x4 - core index']
  #allocation1 [shape = 'u32[72,128]{1,0:T(1,128)}', space=vmem, size = 0x9000, scoped, tag = 'internal scratch']
  %s0 = inlined_call_operand.vmem [shape: f32[2,8,384], index: 0, kind: input, shape index: {}]
  %s1 = inlined_call_operand.vmem [shape: f32[9,8,8], index: 1, kind: input, shape index: {}]
  %s2 = inlined_call_operand.vmem [shape: f32[8,1], index: 2, kind: input, shape index: {}]
  %s3 = inlined_call_operand.vmem [shape: f32[8,1], index: 3, kind: input, shape index: {}]
  %s4 = inlined_call_operand.vmem [shape: f32[1,288], index: 4, kind: input, shape index: {}]
  %s5 = inlined_call_operand.vmem [shape: f32[2,8,288], index: 5, kind: output, shape index: {}]
  %s6 = sld [smem:[#allocation0]]
  $region53: #{residual_layer_forward.2} parent=0
    _
  %s8 = ssub.s32 1, %s6
  %s9 = scalar_select 0, %s8, %s6
  loop: start=0, step=1, limit=4
  $region2: #{residual_layer_forward.2} parent=0 // loop_pre_header
    _
  $region3: #{residual_layer_forward.2} parent=0 // loop_header
    %s11 = sphi 0, %s15
    %p12 = scmp.ge.s32.totalorder %s11, 4
    %s18 = sphi 0, %s30
    %s19 = sphi 0, %s26
    %s20 = sphi 0, %s18
    %s21 = sphi 0, %s19
    %s22 = sphi 0, %s20
    %s23 = sphi 0, %s21
    %s33 = sphi 0, %s35
    %s36 = sphi 0, %s33
    %s37 = sphi 0, %s36
    %s53 = sphi 0, %s37
    %s59 = sphi 0, %s61
    %s62 = sphi 0, %s59
    %s63 = sphi 0, %s62
    %s79 = sphi 0, %s63
    %s85 = sphi 0, %s87
    %s88 = sphi 0, %s85
    %s89 = sphi 0, %s88
    %s105 = sphi 0, %s89
    %s111 = sphi 0, %s113
    %s114 = sphi 0, %s111
    %s115 = sphi 0, %s114
    %s131 = sphi 0, %s115
    %s135 = sphi 0, %s135
    %s137 = sphi 0, %s135
    %s138 = sphi 0, %s137
    %s152 = sphi 0, %s138
    %s160 = sphi 0, %s162
    %s163 = sphi 0, %s160
    %s164 = sphi 0, %s163
    %s180 = sphi 0, %s164
  $region4: #{residual_layer_forward.2} parent=0 // loop_header_branch
    %14 = sbr.rel (%p12) target = $region8
  $region5: #{residual_layer_forward.2} parent=0 // loop_body
    %s16 = ssub.s32 %s11, 1
    %s17 = ssub.s32 %s11, 2
    %s24 = sadd.s32 1, %s19
    %p25 = scmp.ge.s32.totalorder %s24, 1
    %s26 = scalar_select %p25, 0, %s24
    %s27 = sadd.s32 1, %s18
    %s28 = scalar_select %p25, %s27, %s18
    %p29 = scmp.ge.s32.totalorder %s28, 2
    %s30 = scalar_select %p29, 0, %s28
    %s31 = ssub.s32 %s18, %s30
    %p32 = scmp.eq.s32.totalorder %s31, 0
    %s34 = sadd.s32 %s33, 1
    %s35 = scalar_select %p32, %s33, %s34
    %p38 = pneg %p32
    %p39 = scmp.eq.s32.totalorder %s11, 1
    %p40 = por %p38, %p39
    %p41 = scmp.ne.s32.totalorder %s33, %s36
    %p42 = scmp.eq.s32.totalorder %s11, 0
    %p43 = por %p41, %p42
    %p44 = scmp.ne.s32.totalorder %s33, %s36
    %p45 = scmp.eq.s32.totalorder %s16, 1
    %p46 = por %p44, %p45
    %p47 = scmp.ne.s32.totalorder %s36, %s37
    %p48 = scmp.eq.s32.totalorder %s16, 0
    %p49 = por %p47, %p48
    %p50 = scmp.ne.s32.totalorder %s36, %s37
    %p51 = scmp.eq.s32.totalorder %s17, 1
    %p52 = por %p50, %p51
    %p54 = scmp.ne.s32.totalorder %s37, %s53
    %p55 = scmp.eq.s32.totalorder %s17, 0
    %p56 = por %p54, %p55
    %s57 = ssub.s32 %s19, %s26
    %p58 = scmp.eq.s32.totalorder %s57, 0
    %s60 = sadd.s32 %s59, 1
    %s61 = scalar_select %p58, %s59, %s60
    %p64 = pneg %p58
    %p65 = scmp.eq.s32.totalorder %s11, 1
    %p66 = por %p64, %p65
    %p67 = scmp.ne.s32.totalorder %s59, %s62
    %p68 = scmp.eq.s32.totalorder %s11, 0
    %p69 = por %p67, %p68
    %p70 = scmp.ne.s32.totalorder %s59, %s62
    %p71 = scmp.eq.s32.totalorder %s16, 1
    %p72 = por %p70, %p71
    %p73 = scmp.ne.s32.totalorder %s62, %s63
    %p74 = scmp.eq.s32.totalorder %s16, 0
    %p75 = por %p73, %p74
    %p76 = scmp.ne.s32.totalorder %s62, %s63
    %p77 = scmp.eq.s32.totalorder %s17, 1
    %p78 = por %p76, %p77
    %p80 = scmp.ne.s32.totalorder %s63, %s79
    %p81 = scmp.eq.s32.totalorder %s17, 0
    %p82 = por %p80, %p81
    %s83 = ssub.s32 %s19, %s26
    %p84 = scmp.eq.s32.totalorder %s83, 0
    %s86 = sadd.s32 %s85, 1
    %s87 = scalar_select %p84, %s85, %s86
    %p90 = pneg %p84
    %p91 = scmp.eq.s32.totalorder %s11, 1
    %p92 = por %p90, %p91
    %p93 = scmp.ne.s32.totalorder %s85, %s88
    %p94 = scmp.eq.s32.totalorder %s11, 0
    %p95 = por %p93, %p94
    %p96 = scmp.ne.s32.totalorder %s85, %s88
    %p97 = scmp.eq.s32.totalorder %s16, 1
    %p98 = por %p96, %p97
    %p99 = scmp.ne.s32.totalorder %s88, %s89
    %p100 = scmp.eq.s32.totalorder %s16, 0
    %p101 = por %p99, %p100
    %p102 = scmp.ne.s32.totalorder %s88, %s89
    %p103 = scmp.eq.s32.totalorder %s17, 1
    %p104 = por %p102, %p103
    %p106 = scmp.ne.s32.totalorder %s89, %s105
    %p107 = scmp.eq.s32.totalorder %s17, 0
    %p108 = por %p106, %p107
    %s109 = ssub.s32 %s19, %s26
    %p110 = scmp.eq.s32.totalorder %s109, 0
    %s112 = sadd.s32 %s111, 1
    %s113 = scalar_select %p110, %s111, %s112
    %p116 = pneg %p110
    %p117 = scmp.eq.s32.totalorder %s11, 1
    %p118 = por %p116, %p117
    %p119 = scmp.ne.s32.totalorder %s111, %s114
    %p120 = scmp.eq.s32.totalorder %s11, 0
    %p121 = por %p119, %p120
    %p122 = scmp.ne.s32.totalorder %s111, %s114
    %p123 = scmp.eq.s32.totalorder %s16, 1
    %p124 = por %p122, %p123
    %p125 = scmp.ne.s32.totalorder %s114, %s115
    %p126 = scmp.eq.s32.totalorder %s16, 0
    %p127 = por %p125, %p126
    %p128 = scmp.ne.s32.totalorder %s114, %s115
    %p129 = scmp.eq.s32.totalorder %s17, 1
    %p130 = por %p128, %p129
    %p132 = scmp.ne.s32.totalorder %s115, %s131
    %p133 = scmp.eq.s32.totalorder %s17, 0
    %p134 = por %p132, %p133
    %s136 = sadd.s32 %s135, 1
    %p139 = scmp.eq.s32.totalorder %s11, 1
    %p140 = scmp.ne.s32.totalorder %s135, %s137
    %p141 = scmp.eq.s32.totalorder %s11, 0
    %p142 = por %p140, %p141
    %p143 = scmp.ne.s32.totalorder %s135, %s137
    %p144 = scmp.eq.s32.totalorder %s16, 1
    %p145 = por %p143, %p144
    %p146 = scmp.ne.s32.totalorder %s137, %s138
    %p147 = scmp.eq.s32.totalorder %s16, 0
    %p148 = por %p146, %p147
    %p149 = scmp.ne.s32.totalorder %s137, %s138
    %p150 = scmp.eq.s32.totalorder %s17, 1
    %p151 = por %p149, %p150
    %p153 = scmp.ne.s32.totalorder %s138, %s152
    %p154 = scmp.eq.s32.totalorder %s17, 0
    %p155 = por %p153, %p154
    %s156 = ssub.s32 %s18, %s30
    %s157 = ssub.s32 %s19, %s26
    %s158 = sor.u32 %s156, %s157
    %p159 = scmp.eq.s32.totalorder %s158, 0
    %s161 = sadd.s32 %s160, 1
    %s162 = scalar_select %p159, %s160, %s161
    %p165 = pneg %p159
    %p166 = scmp.eq.s32.totalorder %s11, 1
    %p167 = por %p165, %p166
    %p168 = scmp.ne.s32.totalorder %s160, %s163
    %p169 = scmp.eq.s32.totalorder %s11, 0
    %p170 = por %p168, %p169
    %p171 = scmp.ne.s32.totalorder %s160, %s163
    %p172 = scmp.eq.s32.totalorder %s16, 1
    %p173 = por %p171, %p172
    %p174 = scmp.ne.s32.totalorder %s163, %s164
    %p175 = scmp.eq.s32.totalorder %s16, 0
    %p176 = por %p174, %p175
    %p177 = scmp.ne.s32.totalorder %s163, %s164
    %p178 = scmp.eq.s32.totalorder %s17, 1
    %p179 = por %p177, %p178
    %p181 = scmp.ne.s32.totalorder %s164, %s180
    %p182 = scmp.eq.s32.totalorder %s17, 0
    %p183 = por %p181, %p182
    %p184 = scmp.le.s32.totalorder 1, %s11
    %p185 = scmp.lt.s32.totalorder %s11, 3
    %p186 = pnand %p184, %p185
    %p187 = pneg %p186
    // Predicated region
    $region9: #{residual_layer_forward.2} parent=5 // pred_check
      _
    $region10: #{residual_layer_forward.2} parent=5 // pred_check_branch
      %189 = sbr.rel (%p186) target = $region12
    $region11: #{residual_layer_forward.2} parent=5 // pred_region
      %s190 = ssub.s32 %s11, 1
      // Predicated region
      $region13: #{residual_layer_forward.2} parent=11 // pred_check
        %p191 = pneg %p75
      $region14: #{residual_layer_forward.2} parent=11 // pred_check_branch
        %193 = sbr.rel (%p191) target = $region16
      $region15: #{residual_layer_forward.2} parent=11 // pred_region
        %p194 = scmp.lt.s32.totalorder %s21, 0
        %s195 = scalar_select %p194, %s21, 0
        %s196 = smul.addr %s195, 8
        %s197 = scalar_lea.vmem %s1, %s196
      $region16: #{residual_layer_forward.2} parent=11 // pred_fallthru
        _
      // Predicated region
      $region17: #{residual_layer_forward.2} parent=11 // pred_check
        %p198 = pneg %p101
      $region18: #{residual_layer_forward.2} parent=11 // pred_check_branch
        %200 = sbr.rel (%p198) target = $region20
      $region19: #{residual_layer_forward.2} parent=11 // pred_region
        %p201 = scmp.lt.s32.totalorder %s21, 0
        %s202 = scalar_select %p201, %s21, 0
        %s203 = smul.addr %s202, 8
        %s204 = scalar_lea.vmem %s2, %s203
      $region20: #{residual_layer_forward.2} parent=11 // pred_fallthru
        _
      // Predicated region
      $region21: #{residual_layer_forward.2} parent=11 // pred_check
        %p205 = pneg %p127
      $region22: #{residual_layer_forward.2} parent=11 // pred_check_branch
        %207 = sbr.rel (%p205) target = $region24
      $region23: #{residual_layer_forward.2} parent=11 // pred_region
        %p208 = scmp.lt.s32.totalorder %s21, 0
        %s209 = scalar_select %p208, %s21, 0
        %s210 = smul.addr %s209, 8
        %s211 = scalar_lea.vmem %s3, %s210
      $region24: #{residual_layer_forward.2} parent=11 // pred_fallthru
        _
      // Predicated region
      $region25: #{residual_layer_forward.2} parent=11 // pred_check
        %p212 = pneg %p148
      $region26: #{residual_layer_forward.2} parent=11 // pred_check_branch
        %214 = sbr.rel (%p212) target = $region28
      $region27: #{residual_layer_forward.2} parent=11 // pred_region
        _
      $region28: #{residual_layer_forward.2} parent=11 // pred_fallthru
        _
    $region12: #{residual_layer_forward.2} parent=5 // pred_fallthru
      _
    %p215 = scmp.lt.s32.totalorder %s11, 2
    // Predicated region
    $region29: #{residual_layer_forward.2} parent=5 // pred_check
      %p216 = pneg %p215
    $region30: #{residual_layer_forward.2} parent=5 // pred_check_branch
      %218 = sbr.rel (%p216) target = $region32
    $region31: #{residual_layer_forward.2} parent=5 // pred_region
      // Predicated region
      $region33: #{residual_layer_forward.2} parent=31 // pred_check
        %p219 = pneg %p43
      $region34: #{residual_layer_forward.2} parent=31 // pred_check_branch
        %221 = sbr.rel (%p219) target = $region36
      $region35: #{residual_layer_forward.2} parent=31 // pred_region
        %p222 = scmp.lt.s32.totalorder %s18, 1
        %s223 = scalar_select %p222, %s18, 1
        %s224 = smul.addr %s223, 3
        %s225 = smul.addr %s224, 8
        %s226 = scalar_lea.vmem %s0, %s225
      $region36: #{residual_layer_forward.2} parent=31 // pred_fallthru
        _
    $region32: #{residual_layer_forward.2} parent=5 // pred_fallthru
      _
    %p227 = scmp.le.s32.totalorder 1, %s11
    %p228 = scmp.lt.s32.totalorder %s11, 3
    %p229 = pnand %p227, %p228
    %p230 = pneg %p229
    // Predicated region
    $region37: #{residual_layer_forward.2} parent=5 // pred_check
      _
    $region38: #{residual_layer_forward.2} parent=5 // pred_check_branch
      %232 = sbr.rel (%p229) target = $region40
    $region39: #{residual_layer_forward.2} parent=5 // pred_region
      %s233 = ssub.s32 %s11, 1
      %p234 = scmp.lt.s32.totalorder %s20, 1
      %s235 = scalar_select %p234, %s20, 1
      %s236 = smul.addr %s235, 3
      %s237 = smul.addr %s236, 8
      %s238 = scalar_lea.vmem %s0, %s237
      %p239 = pneg %p49
      %p240 = pneg %p46
      %p241 = scmp.lt.s32.totalorder %s21, 0
      %s242 = scalar_select %p241, %s21, 0
      %s243 = smul.addr %s242, 8
      %s244 = scalar_lea.vmem %s1, %s243
      %p245 = pneg %p75
      %p246 = pneg %p72
      %p247 = scmp.lt.s32.totalorder %s21, 0
      %s248 = scalar_select %p247, %s21, 0
      %s249 = smul.addr %s248, 8
      %s250 = scalar_lea.vmem %s2, %s249
      %p251 = pneg %p101
      %p252 = pneg %p98
      %p253 = scmp.lt.s32.totalorder %s21, 0
      %s254 = scalar_select %p253, %s21, 0
      %s255 = smul.addr %s254, 8
      %s256 = scalar_lea.vmem %s3, %s255
      %p257 = pneg %p127
      %p258 = pneg %p124
      %p259 = pneg %p148
      %p260 = pneg %p145
      %p261 = pneg %p176
      %p262 = pneg %p173
      %p263 = scmp.lt.s32.totalorder %s20, 1
      %s264 = scalar_select %p263, %s20, 1
      %p265 = scmp.lt.s32.totalorder %s21, 0
      %s266 = scalar_select %p265, %s21, 0
      %s267 = smul.addr %s266, 3
      %s268 = smul.addr %s264, 3
      %s269 = sadd.s32 %s267, %s268
      %s270 = smul.addr %s269, 8
      %s271 = scalar_lea.vmem %s5, %s270
      %p272 = scmp.lt.s32.totalorder %s20, 1
      %s273 = scalar_select %p272, %s20, 1
      %s274 = smul.addr %s273, 3
      %s275 = smul.addr %s274, 8
      %s276 = scalar_lea.vmem %s0, %s275
      %p277 = scmp.lt.s32.totalorder %s21, 0
      %s278 = scalar_select %p277, %s21, 0
      %s279 = smul.addr %s278, 8
      %s280 = scalar_lea.vmem %s1, %s279
      %p281 = scmp.lt.s32.totalorder %s21, 0
      %s282 = scalar_select %p281, %s21, 0
      %s283 = smul.addr %s282, 8
      %s284 = scalar_lea.vmem %s2, %s283
      %p285 = scmp.lt.s32.totalorder %s21, 0
      %s286 = scalar_select %p285, %s21, 0
      %s287 = smul.addr %s286, 8
      %s288 = scalar_lea.vmem %s3, %s287
      %p289 = scmp.lt.s32.totalorder %s20, 1
      %s290 = scalar_select %p289, %s20, 1
      %p291 = scmp.lt.s32.totalorder %s21, 0
      %s292 = scalar_select %p291, %s21, 0
      %s293 = smul.addr %s292, 3
      %s294 = smul.addr %s290, 3
      %s295 = sadd.s32 %s293, %s294
      %s296 = smul.addr %s295, 8
      %s297 = scalar_lea.vmem %s5, %s296
      %v298 = vld [vmem:[%s276] sm:$0xff]
      %v299 = vld [vmem:[%s276 + $0x8] sm:$0xff]
      %v300 = vld [vmem:[%s276 + $0x10] sm:$0xff]
      %v301 = vld [vmem:[%s280] sm:$0xff]
      %s302 = scalar_lea.vmem %s280, 8
      %v303 = vld [vmem:[%s302] sm:$0xff]
      %307 = vrot.lane.b32.xlu0 %v298, 127
      %v308 = vpop.permute.xlu0 %307
      %309 = vrot.lane.b32.xlu0 %v299, 127
      %v310 = vpop.permute.xlu0 %309
      %311 = vrot.lane.b32.xlu0 %v300, 127
      %v312 = vpop.permute.xlu0 %311
      %vm313 = vcmask 1039360
      %v314 = vsel %vm313, %v308, %v310
      %v315 = vsel %vm313, %v310, %v312
      %vm319 = vcmask 64512
      %v321 = vsel %vm319, %v303, 0
      %323 = vmatpush.msra.mxu0 0.0
      %324 = vmatpush.msra.mxu0 0.0
      %325 = vmatpush.msra.mxu0 0.0
      %326 = vmatpush.msra.mxu0 0.0
      %327 = vmatpush.msra.mxu0 0.0
      %328 = vmatpush.msra.mxu0 0.0
      %329 = vmatpush.msra.mxu0 0.0
      %330 = vmatpush.msra.mxu0 0.0
      %331 = vmatpush.msra.mxu0 0.0
      %332 = vmatpush.msra.mxu0 0.0
      %333 = vmatpush.msra.mxu0 0.0
      %334 = vmatpush.msra.mxu0 0.0
      %335 = vmatpush.msra.mxu0 0.0
      %336 = vmatpush.msra.mxu0 0.0
      %337 = vmatpush.msra.mxu0 0.0
      %338 = vmatpush.msra.mxu0 %v314
      %339 = vmatmul.f32.gmra.mxu0 %v321
      %v340 = vpop.f32.mrf.mxu0
      %v341 = vadd.f32 0.0, %v340
      %342 = vdwg.mxu0
      %343 = vmatpush.msra.mxu0 0.0
      %344 = vmatpush.msra.mxu0 0.0
      %345 = vmatpush.msra.mxu0 0.0
      %346 = vmatpush.msra.mxu0 0.0
      %347 = vmatpush.msra.mxu0 0.0
      %348 = vmatpush.msra.mxu0 0.0
      %349 = vmatpush.msra.mxu0 0.0
      %350 = vmatpush.msra.mxu0 0.0
      %351 = vmatpush.msra.mxu0 0.0
      %352 = vmatpush.msra.mxu0 0.0
      %353 = vmatpush.msra.mxu0 0.0
      %354 = vmatpush.msra.mxu0 0.0
      %355 = vmatpush.msra.mxu0 0.0
      %356 = vmatpush.msra.mxu0 0.0
      %357 = vmatpush.msra.mxu0 0.0
      %358 = vmatpush.msra.mxu0 %v315
      %359 = vmatmul.f32.gmra.mxu0 %v321
      %v360 = vpop.f32.mrf.mxu0
      %v361 = vadd.f32 0.0, %v360
      %362 = vdwg.mxu0
      %363 = vmatpush.msra.mxu0 0.0
      %364 = vmatpush.msra.mxu0 0.0
      %365 = vmatpush.msra.mxu0 0.0
      %366 = vmatpush.msra.mxu0 0.0
      %367 = vmatpush.msra.mxu0 0.0
      %368 = vmatpush.msra.mxu0 0.0
      %369 = vmatpush.msra.mxu0 0.0
      %370 = vmatpush.msra.mxu0 0.0
      %371 = vmatpush.msra.mxu0 0.0
      %372 = vmatpush.msra.mxu0 0.0
      %373 = vmatpush.msra.mxu0 0.0
      %374 = vmatpush.msra.mxu0 0.0
      %375 = vmatpush.msra.mxu0 0.0
      %376 = vmatpush.msra.mxu0 0.0
      %377 = vmatpush.msra.mxu0 0.0
      %378 = vmatpush.msra.mxu0 %v312
      %379 = vmatmul.f32.gmra.mxu0 %v321
      %v380 = vpop.f32.mrf.mxu0
      %v381 = vadd.f32 0.0, %v380
      %382 = vdwg.mxu0
      %v384 = vsel %vm319, %v301, 0
      %386 = vmatpush.msra.mxu0 0.0
      %387 = vmatpush.msra.mxu0 0.0
      %388 = vmatpush.msra.mxu0 0.0
      %389 = vmatpush.msra.mxu0 0.0
      %390 = vmatpush.msra.mxu0 0.0
      %391 = vmatpush.msra.mxu0 0.0
      %392 = vmatpush.msra.mxu0 0.0
      %393 = vmatpush.msra.mxu0 0.0
      %394 = vmatpush.msra.mxu0 0.0
      %395 = vmatpush.msra.mxu0 0.0
      %396 = vmatpush.msra.mxu0 0.0
      %397 = vmatpush.msra.mxu0 0.0
      %398 = vmatpush.msra.mxu0 0.0
      %399 = vmatpush.msra.mxu0 0.0
      %400 = vmatpush.msra.mxu0 0.0
      %401 = vmatpush.msra.mxu0 %v298
      %402 = vmatmul.f32.gmra.mxu0 %v384
      %v403 = vpop.f32.mrf.mxu0
      %v404 = vadd.f32 %v341, %v403
      %405 = vdwg.mxu0
      %406 = vmatpush.msra.mxu0 0.0
      %407 = vmatpush.msra.mxu0 0.0
      %408 = vmatpush.msra.mxu0 0.0
      %409 = vmatpush.msra.mxu0 0.0
      %410 = vmatpush.msra.mxu0 0.0
      %411 = vmatpush.msra.mxu0 0.0
      %412 = vmatpush.msra.mxu0 0.0
      %413 = vmatpush.msra.mxu0 0.0
      %414 = vmatpush.msra.mxu0 0.0
      %415 = vmatpush.msra.mxu0 0.0
      %416 = vmatpush.msra.mxu0 0.0
      %417 = vmatpush.msra.mxu0 0.0
      %418 = vmatpush.msra.mxu0 0.0
      %419 = vmatpush.msra.mxu0 0.0
      %420 = vmatpush.msra.mxu0 0.0
      %421 = vmatpush.msra.mxu0 %v299
      %422 = vmatmul.f32.gmra.mxu0 %v384
      %v423 = vpop.f32.mrf.mxu0
      %v424 = vadd.f32 %v361, %v423
      %425 = vdwg.mxu0
      %426 = vmatpush.msra.mxu0 0.0
      %427 = vmatpush.msra.mxu0 0.0
      %428 = vmatpush.msra.mxu0 0.0
      %429 = vmatpush.msra.mxu0 0.0
      %430 = vmatpush.msra.mxu0 0.0
      %431 = vmatpush.msra.mxu0 0.0
      %432 = vmatpush.msra.mxu0 0.0
      %433 = vmatpush.msra.mxu0 0.0
      %434 = vmatpush.msra.mxu0 0.0
      %435 = vmatpush.msra.mxu0 0.0
      %436 = vmatpush.msra.mxu0 0.0
      %437 = vmatpush.msra.mxu0 0.0
      %438 = vmatpush.msra.mxu0 0.0
      %439 = vmatpush.msra.mxu0 0.0
      %440 = vmatpush.msra.mxu0 0.0
      %441 = vmatpush.msra.mxu0 %v300
      %442 = vmatmul.f32.gmra.mxu0 %v384
      %v443 = vpop.f32.mrf.mxu0
      %v444 = vadd.f32 %v381, %v443
      %445 = vdwg.mxu0
      %s446 = scalar_lea.vmem %s280, 16
      %v447 = vld [vmem:[%s446] sm:$0xff]
      %448 = vrot.lane.b32.xlu0 %v298, 126
      %v449 = vpop.permute.xlu0 %448
      %450 = vrot.lane.b32.xlu0 %v299, 126
      %v451 = vpop.permute.xlu0 %450
      %452 = vrot.lane.b32.xlu0 %v300, 126
      %v453 = vpop.permute.xlu0 %452
      %vm454 = vcmask 1031168
      %v455 = vsel %vm454, %v449, %v451
      %v456 = vsel %vm454, %v451, %v453
      %v461 = vsel %vm319, %v447, 0
      %463 = vmatpush.msra.mxu0 0.0
      %464 = vmatpush.msra.mxu0 0.0
      %465 = vmatpush.msra.mxu0 0.0
      %466 = vmatpush.msra.mxu0 0.0
      %467 = vmatpush.msra.mxu0 0.0
      %468 = vmatpush.msra.mxu0 0.0
      %469 = vmatpush.msra.mxu0 0.0
      %470 = vmatpush.msra.mxu0 0.0
      %471 = vmatpush.msra.mxu0 0.0
      %472 = vmatpush.msra.mxu0 0.0
      %473 = vmatpush.msra.mxu0 0.0
      %474 = vmatpush.msra.mxu0 0.0
      %475 = vmatpush.msra.mxu0 0.0
      %476 = vmatpush.msra.mxu0 0.0
      %477 = vmatpush.msra.mxu0 0.0
      %478 = vmatpush.msra.mxu0 %v455
      %479 = vmatmul.f32.gmra.mxu0 %v461
      %v480 = vpop.f32.mrf.mxu0
      %v481 = vadd.f32 0.0, %v480
      %482 = vdwg.mxu0
      %483 = vmatpush.msra.mxu0 0.0
      %484 = vmatpush.msra.mxu0 0.0
      %485 = vmatpush.msra.mxu0 0.0
      %486 = vmatpush.msra.mxu0 0.0
      %487 = vmatpush.msra.mxu0 0.0
      %488 = vmatpush.msra.mxu0 0.0
      %489 = vmatpush.msra.mxu0 0.0
      %490 = vmatpush.msra.mxu0 0.0
      %491 = vmatpush.msra.mxu0 0.0
      %492 = vmatpush.msra.mxu0 0.0
      %493 = vmatpush.msra.mxu0 0.0
      %494 = vmatpush.msra.mxu0 0.0
      %495 = vmatpush.msra.mxu0 0.0
      %496 = vmatpush.msra.mxu0 0.0
      %497 = vmatpush.msra.mxu0 0.0
      %498 = vmatpush.msra.mxu0 %v456
      %499 = vmatmul.f32.gmra.mxu0 %v461
      %v500 = vpop.f32.mrf.mxu0
      %v501 = vadd.f32 0.0, %v500
      %502 = vdwg.mxu0
      %503 = vmatpush.msra.mxu0 0.0
      %504 = vmatpush.msra.mxu0 0.0
      %505 = vmatpush.msra.mxu0 0.0
      %506 = vmatpush.msra.mxu0 0.0
      %507 = vmatpush.msra.mxu0 0.0
      %508 = vmatpush.msra.mxu0 0.0
      %509 = vmatpush.msra.mxu0 0.0
      %510 = vmatpush.msra.mxu0 0.0
      %511 = vmatpush.msra.mxu0 0.0
      %512 = vmatpush.msra.mxu0 0.0
      %513 = vmatpush.msra.mxu0 0.0
      %514 = vmatpush.msra.mxu0 0.0
      %515 = vmatpush.msra.mxu0 0.0
      %516 = vmatpush.msra.mxu0 0.0
      %517 = vmatpush.msra.mxu0 0.0
      %518 = vmatpush.msra.mxu0 %v453
      %519 = vmatmul.f32.gmra.mxu0 %v461
      %v520 = vpop.f32.mrf.mxu0
      %v521 = vadd.f32 0.0, %v520
      %522 = vdwg.mxu0
      %v523 = vadd.f32 %v404, %v481
      %v524 = vadd.f32 %v424, %v501
      %v525 = vadd.f32 %v444, %v521
      %s526 = scalar_lea.vmem %s280, 24
      %v527 = vld [vmem:[%s526] sm:$0xff]
      %528 = vrot.lane.b32.xlu0 %v298, 110
      %v529 = vpop.permute.xlu0 %528
      %530 = vrot.lane.b32.xlu0 %v299, 110
      %v531 = vpop.permute.xlu0 %530
      %532 = vrot.lane.b32.xlu0 %v300, 110
      %v533 = vpop.permute.xlu0 %532
      %vm534 = vcmask 900096
      %v535 = vsel %vm534, %v529, %v531
      %v536 = vsel %vm534, %v531, %v533
      %v541 = vsel %vm319, %v527, 0
      %543 = vmatpush.msra.mxu0 0.0
      %544 = vmatpush.msra.mxu0 0.0
      %545 = vmatpush.msra.mxu0 0.0
      %546 = vmatpush.msra.mxu0 0.0
      %547 = vmatpush.msra.mxu0 0.0
      %548 = vmatpush.msra.mxu0 0.0
      %549 = vmatpush.msra.mxu0 0.0
      %550 = vmatpush.msra.mxu0 0.0
      %551 = vmatpush.msra.mxu0 0.0
      %552 = vmatpush.msra.mxu0 0.0
      %553 = vmatpush.msra.mxu0 0.0
      %554 = vmatpush.msra.mxu0 0.0
      %555 = vmatpush.msra.mxu0 0.0
      %556 = vmatpush.msra.mxu0 0.0
      %557 = vmatpush.msra.mxu0 0.0
      %558 = vmatpush.msra.mxu0 %v535
      %559 = vmatmul.f32.gmra.mxu0 %v541
      %v560 = vpop.f32.mrf.mxu0
      %v561 = vadd.f32 0.0, %v560
      %562 = vdwg.mxu0
      %563 = vmatpush.msra.mxu0 0.0
      %564 = vmatpush.msra.mxu0 0.0
      %565 = vmatpush.msra.mxu0 0.0
      %566 = vmatpush.msra.mxu0 0.0
      %567 = vmatpush.msra.mxu0 0.0
      %568 = vmatpush.msra.mxu0 0.0
      %569 = vmatpush.msra.mxu0 0.0
      %570 = vmatpush.msra.mxu0 0.0
      %571 = vmatpush.msra.mxu0 0.0
      %572 = vmatpush.msra.mxu0 0.0
      %573 = vmatpush.msra.mxu0 0.0
      %574 = vmatpush.msra.mxu0 0.0
      %575 = vmatpush.msra.mxu0 0.0
      %576 = vmatpush.msra.mxu0 0.0
      %577 = vmatpush.msra.mxu0 0.0
      %578 = vmatpush.msra.mxu0 %v536
      %579 = vmatmul.f32.gmra.mxu0 %v541
      %v580 = vpop.f32.mrf.mxu0
      %v581 = vadd.f32 0.0, %v580
      %582 = vdwg.mxu0
      %583 = vmatpush.msra.mxu0 0.0
      %584 = vmatpush.msra.mxu0 0.0
      %585 = vmatpush.msra.mxu0 0.0
      %586 = vmatpush.msra.mxu0 0.0
      %587 = vmatpush.msra.mxu0 0.0
      %588 = vmatpush.msra.mxu0 0.0
      %589 = vmatpush.msra.mxu0 0.0
      %590 = vmatpush.msra.mxu0 0.0
      %591 = vmatpush.msra.mxu0 0.0
      %592 = vmatpush.msra.mxu0 0.0
      %593 = vmatpush.msra.mxu0 0.0
      %594 = vmatpush.msra.mxu0 0.0
      %595 = vmatpush.msra.mxu0 0.0
      %596 = vmatpush.msra.mxu0 0.0
      %597 = vmatpush.msra.mxu0 0.0
      %598 = vmatpush.msra.mxu0 %v533
      %599 = vmatmul.f32.gmra.mxu0 %v541
      %v600 = vpop.f32.mrf.mxu0
      %v601 = vadd.f32 0.0, %v600
      %602 = vdwg.mxu0
      %v603 = vadd.f32 %v523, %v561
      %v604 = vadd.f32 %v524, %v581
      %v605 = vadd.f32 %v525, %v601
      %s606 = scalar_lea.vmem %s280, 32
      %v607 = vld [vmem:[%s606] sm:$0xff]
      %608 = vrot.lane.b32.xlu0 %v298, 109
      %v609 = vpop.permute.xlu0 %608
      %610 = vrot.lane.b32.xlu0 %v299, 109
      %v611 = vpop.permute.xlu0 %610
      %612 = vrot.lane.b32.xlu0 %v300, 109
      %v613 = vpop.permute.xlu0 %612
      %vm614 = vcmask 891904
      %v615 = vsel %vm614, %v609, %v611
      %v616 = vsel %vm614, %v611, %v613
      %v621 = vsel %vm319, %v607, 0
      %623 = vmatpush.msra.mxu0 0.0
      %624 = vmatpush.msra.mxu0 0.0
      %625 = vmatpush.msra.mxu0 0.0
      %626 = vmatpush.msra.mxu0 0.0
      %627 = vmatpush.msra.mxu0 0.0
      %628 = vmatpush.msra.mxu0 0.0
      %629 = vmatpush.msra.mxu0 0.0
      %630 = vmatpush.msra.mxu0 0.0
      %631 = vmatpush.msra.mxu0 0.0
      %632 = vmatpush.msra.mxu0 0.0
      %633 = vmatpush.msra.mxu0 0.0
      %634 = vmatpush.msra.mxu0 0.0
      %635 = vmatpush.msra.mxu0 0.0
      %636 = vmatpush.msra.mxu0 0.0
      %637 = vmatpush.msra.mxu0 0.0
      %638 = vmatpush.msra.mxu0 %v615
      %639 = vmatmul.f32.gmra.mxu0 %v621
      %v640 = vpop.f32.mrf.mxu0
      %v641 = vadd.f32 0.0, %v640
      %642 = vdwg.mxu0
      %643 = vmatpush.msra.mxu0 0.0
      %644 = vmatpush.msra.mxu0 0.0
      %645 = vmatpush.msra.mxu0 0.0
      %646 = vmatpush.msra.mxu0 0.0
      %647 = vmatpush.msra.mxu0 0.0
      %648 = vmatpush.msra.mxu0 0.0
      %649 = vmatpush.msra.mxu0 0.0
      %650 = vmatpush.msra.mxu0 0.0
      %651 = vmatpush.msra.mxu0 0.0
      %652 = vmatpush.msra.mxu0 0.0
      %653 = vmatpush.msra.mxu0 0.0
      %654 = vmatpush.msra.mxu0 0.0
      %655 = vmatpush.msra.mxu0 0.0
      %656 = vmatpush.msra.mxu0 0.0
      %657 = vmatpush.msra.mxu0 0.0
      %658 = vmatpush.msra.mxu0 %v616
      %659 = vmatmul.f32.gmra.mxu0 %v621
      %v660 = vpop.f32.mrf.mxu0
      %v661 = vadd.f32 0.0, %v660
      %662 = vdwg.mxu0
      %663 = vmatpush.msra.mxu0 0.0
      %664 = vmatpush.msra.mxu0 0.0
      %665 = vmatpush.msra.mxu0 0.0
      %666 = vmatpush.msra.mxu0 0.0
      %667 = vmatpush.msra.mxu0 0.0
      %668 = vmatpush.msra.mxu0 0.0
      %669 = vmatpush.msra.mxu0 0.0
      %670 = vmatpush.msra.mxu0 0.0
      %671 = vmatpush.msra.mxu0 0.0
      %672 = vmatpush.msra.mxu0 0.0
      %673 = vmatpush.msra.mxu0 0.0
      %674 = vmatpush.msra.mxu0 0.0
      %675 = vmatpush.msra.mxu0 0.0
      %676 = vmatpush.msra.mxu0 0.0
      %677 = vmatpush.msra.mxu0 0.0
      %678 = vmatpush.msra.mxu0 %v613
      %679 = vmatmul.f32.gmra.mxu0 %v621
      %v680 = vpop.f32.mrf.mxu0
      %v681 = vadd.f32 0.0, %v680
      %682 = vdwg.mxu0
      %v683 = vadd.f32 %v603, %v641
      %v684 = vadd.f32 %v604, %v661
      %v685 = vadd.f32 %v605, %v681
      %s686 = scalar_lea.vmem %s280, 40
      %v687 = vld [vmem:[%s686] sm:$0xff]
      %688 = vrot.lane.b32.xlu0 %v298, 108
      %v689 = vpop.permute.xlu0 %688
      %690 = vrot.lane.b32.xlu0 %v299, 108
      %v691 = vpop.permute.xlu0 %690
      %692 = vrot.lane.b32.xlu0 %v300, 108
      %v693 = vpop.permute.xlu0 %692
      %vm694 = vcmask 883712
      %v695 = vsel %vm694, %v689, %v691
      %v696 = vsel %vm694, %v691, %v693
      %v701 = vsel %vm319, %v687, 0
      %703 = vmatpush.msra.mxu0 0.0
      %704 = vmatpush.msra.mxu0 0.0
      %705 = vmatpush.msra.mxu0 0.0
      %706 = vmatpush.msra.mxu0 0.0
      %707 = vmatpush.msra.mxu0 0.0
      %708 = vmatpush.msra.mxu0 0.0
      %709 = vmatpush.msra.mxu0 0.0
      %710 = vmatpush.msra.mxu0 0.0
      %711 = vmatpush.msra.mxu0 0.0
      %712 = vmatpush.msra.mxu0 0.0
      %713 = vmatpush.msra.mxu0 0.0
      %714 = vmatpush.msra.mxu0 0.0
      %715 = vmatpush.msra.mxu0 0.0
      %716 = vmatpush.msra.mxu0 0.0
      %717 = vmatpush.msra.mxu0 0.0
      %718 = vmatpush.msra.mxu0 %v695
      %719 = vmatmul.f32.gmra.mxu0 %v701
      %v720 = vpop.f32.mrf.mxu0
      %v721 = vadd.f32 0.0, %v720
      %722 = vdwg.mxu0
      %723 = vmatpush.msra.mxu0 0.0
      %724 = vmatpush.msra.mxu0 0.0
      %725 = vmatpush.msra.mxu0 0.0
      %726 = vmatpush.msra.mxu0 0.0
      %727 = vmatpush.msra.mxu0 0.0
      %728 = vmatpush.msra.mxu0 0.0
      %729 = vmatpush.msra.mxu0 0.0
      %730 = vmatpush.msra.mxu0 0.0
      %731 = vmatpush.msra.mxu0 0.0
      %732 = vmatpush.msra.mxu0 0.0
      %733 = vmatpush.msra.mxu0 0.0
      %734 = vmatpush.msra.mxu0 0.0
      %735 = vmatpush.msra.mxu0 0.0
      %736 = vmatpush.msra.mxu0 0.0
      %737 = vmatpush.msra.mxu0 0.0
      %738 = vmatpush.msra.mxu0 %v696
      %739 = vmatmul.f32.gmra.mxu0 %v701
      %v740 = vpop.f32.mrf.mxu0
      %v741 = vadd.f32 0.0, %v740
      %742 = vdwg.mxu0
      %743 = vmatpush.msra.mxu0 0.0
      %744 = vmatpush.msra.mxu0 0.0
      %745 = vmatpush.msra.mxu0 0.0
      %746 = vmatpush.msra.mxu0 0.0
      %747 = vmatpush.msra.mxu0 0.0
      %748 = vmatpush.msra.mxu0 0.0
      %749 = vmatpush.msra.mxu0 0.0
      %750 = vmatpush.msra.mxu0 0.0
      %751 = vmatpush.msra.mxu0 0.0
      %752 = vmatpush.msra.mxu0 0.0
      %753 = vmatpush.msra.mxu0 0.0
      %754 = vmatpush.msra.mxu0 0.0
      %755 = vmatpush.msra.mxu0 0.0
      %756 = vmatpush.msra.mxu0 0.0
      %757 = vmatpush.msra.mxu0 0.0
      %758 = vmatpush.msra.mxu0 %v693
      %759 = vmatmul.f32.gmra.mxu0 %v701
      %v760 = vpop.f32.mrf.mxu0
      %v761 = vadd.f32 0.0, %v760
      %762 = vdwg.mxu0
      %v763 = vadd.f32 %v683, %v721
      %v764 = vadd.f32 %v684, %v741
      %v765 = vadd.f32 %v685, %v761
      %s766 = scalar_lea.vmem %s280, 48
      %v767 = vld [vmem:[%s766] sm:$0xff]
      %768 = vrot.lane.b32.xlu0 %v298, 92
      %v769 = vpop.permute.xlu0 %768
      %770 = vrot.lane.b32.xlu0 %v299, 92
      %v771 = vpop.permute.xlu0 %770
      %772 = vrot.lane.b32.xlu0 %v300, 92
      %v773 = vpop.permute.xlu0 %772
      %vm774 = vcmask 752640
      %v775 = vsel %vm774, %v769, %v771
      %v776 = vsel %vm774, %v771, %v773
      %v781 = vsel %vm319, %v767, 0
      %783 = vmatpush.msra.mxu0 0.0
      %784 = vmatpush.msra.mxu0 0.0
      %785 = vmatpush.msra.mxu0 0.0
      %786 = vmatpush.msra.mxu0 0.0
      %787 = vmatpush.msra.mxu0 0.0
      %788 = vmatpush.msra.mxu0 0.0
      %789 = vmatpush.msra.mxu0 0.0
      %790 = vmatpush.msra.mxu0 0.0
      %791 = vmatpush.msra.mxu0 0.0
      %792 = vmatpush.msra.mxu0 0.0
      %793 = vmatpush.msra.mxu0 0.0
      %794 = vmatpush.msra.mxu0 0.0
      %795 = vmatpush.msra.mxu0 0.0
      %796 = vmatpush.msra.mxu0 0.0
      %797 = vmatpush.msra.mxu0 0.0
      %798 = vmatpush.msra.mxu0 %v775
      %799 = vmatmul.f32.gmra.mxu0 %v781
      %v800 = vpop.f32.mrf.mxu0
      %v801 = vadd.f32 0.0, %v800
      %802 = vdwg.mxu0
      %803 = vmatpush.msra.mxu0 0.0
      %804 = vmatpush.msra.mxu0 0.0
      %805 = vmatpush.msra.mxu0 0.0
      %806 = vmatpush.msra.mxu0 0.0
      %807 = vmatpush.msra.mxu0 0.0
      %808 = vmatpush.msra.mxu0 0.0
      %809 = vmatpush.msra.mxu0 0.0
      %810 = vmatpush.msra.mxu0 0.0
      %811 = vmatpush.msra.mxu0 0.0
      %812 = vmatpush.msra.mxu0 0.0
      %813 = vmatpush.msra.mxu0 0.0
      %814 = vmatpush.msra.mxu0 0.0
      %815 = vmatpush.msra.mxu0 0.0
      %816 = vmatpush.msra.mxu0 0.0
      %817 = vmatpush.msra.mxu0 0.0
      %818 = vmatpush.msra.mxu0 %v776
      %819 = vmatmul.f32.gmra.mxu0 %v781
      %v820 = vpop.f32.mrf.mxu0
      %v821 = vadd.f32 0.0, %v820
      %822 = vdwg.mxu0
      %823 = vmatpush.msra.mxu0 0.0
      %824 = vmatpush.msra.mxu0 0.0
      %825 = vmatpush.msra.mxu0 0.0
      %826 = vmatpush.msra.mxu0 0.0
      %827 = vmatpush.msra.mxu0 0.0
      %828 = vmatpush.msra.mxu0 0.0
      %829 = vmatpush.msra.mxu0 0.0
      %830 = vmatpush.msra.mxu0 0.0
      %831 = vmatpush.msra.mxu0 0.0
      %832 = vmatpush.msra.mxu0 0.0
      %833 = vmatpush.msra.mxu0 0.0
      %834 = vmatpush.msra.mxu0 0.0
      %835 = vmatpush.msra.mxu0 0.0
      %836 = vmatpush.msra.mxu0 0.0
      %837 = vmatpush.msra.mxu0 0.0
      %838 = vmatpush.msra.mxu0 %v773
      %839 = vmatmul.f32.gmra.mxu0 %v781
      %v840 = vpop.f32.mrf.mxu0
      %v841 = vadd.f32 0.0, %v840
      %842 = vdwg.mxu0
      %v843 = vadd.f32 %v763, %v801
      %v844 = vadd.f32 %v764, %v821
      %v845 = vadd.f32 %v765, %v841
      %s846 = scalar_lea.vmem %s280, 56
      %v847 = vld [vmem:[%s846] sm:$0xff]
      %848 = vrot.lane.b32.xlu0 %v298, 91
      %v849 = vpop.permute.xlu0 %848
      %850 = vrot.lane.b32.xlu0 %v299, 91
      %v851 = vpop.permute.xlu0 %850
      %852 = vrot.lane.b32.xlu0 %v300, 91
      %v853 = vpop.permute.xlu0 %852
      %vm854 = vcmask 744448
      %v855 = vsel %vm854, %v849, %v851
      %v856 = vsel %vm854, %v851, %v853
      %v861 = vsel %vm319, %v847, 0
      %863 = vmatpush.msra.mxu0 0.0
      %864 = vmatpush.msra.mxu0 0.0
      %865 = vmatpush.msra.mxu0 0.0
      %866 = vmatpush.msra.mxu0 0.0
      %867 = vmatpush.msra.mxu0 0.0
      %868 = vmatpush.msra.mxu0 0.0
      %869 = vmatpush.msra.mxu0 0.0
      %870 = vmatpush.msra.mxu0 0.0
      %871 = vmatpush.msra.mxu0 0.0
      %872 = vmatpush.msra.mxu0 0.0
      %873 = vmatpush.msra.mxu0 0.0
      %874 = vmatpush.msra.mxu0 0.0
      %875 = vmatpush.msra.mxu0 0.0
      %876 = vmatpush.msra.mxu0 0.0
      %877 = vmatpush.msra.mxu0 0.0
      %878 = vmatpush.msra.mxu0 %v855
      %879 = vmatmul.f32.gmra.mxu0 %v861
      %v880 = vpop.f32.mrf.mxu0
      %v881 = vadd.f32 0.0, %v880
      %882 = vdwg.mxu0
      %883 = vmatpush.msra.mxu0 0.0
      %884 = vmatpush.msra.mxu0 0.0
      %885 = vmatpush.msra.mxu0 0.0
      %886 = vmatpush.msra.mxu0 0.0
      %887 = vmatpush.msra.mxu0 0.0
      %888 = vmatpush.msra.mxu0 0.0
      %889 = vmatpush.msra.mxu0 0.0
      %890 = vmatpush.msra.mxu0 0.0
      %891 = vmatpush.msra.mxu0 0.0
      %892 = vmatpush.msra.mxu0 0.0
      %893 = vmatpush.msra.mxu0 0.0
      %894 = vmatpush.msra.mxu0 0.0
      %895 = vmatpush.msra.mxu0 0.0
      %896 = vmatpush.msra.mxu0 0.0
      %897 = vmatpush.msra.mxu0 0.0
      %898 = vmatpush.msra.mxu0 %v856
      %899 = vmatmul.f32.gmra.mxu0 %v861
      %v900 = vpop.f32.mrf.mxu0
      %v901 = vadd.f32 0.0, %v900
      %902 = vdwg.mxu0
      %903 = vmatpush.msra.mxu0 0.0
      %904 = vmatpush.msra.mxu0 0.0
      %905 = vmatpush.msra.mxu0 0.0
      %906 = vmatpush.msra.mxu0 0.0
      %907 = vmatpush.msra.mxu0 0.0
      %908 = vmatpush.msra.mxu0 0.0
      %909 = vmatpush.msra.mxu0 0.0
      %910 = vmatpush.msra.mxu0 0.0
      %911 = vmatpush.msra.mxu0 0.0
      %912 = vmatpush.msra.mxu0 0.0
      %913 = vmatpush.msra.mxu0 0.0
      %914 = vmatpush.msra.mxu0 0.0
      %915 = vmatpush.msra.mxu0 0.0
      %916 = vmatpush.msra.mxu0 0.0
      %917 = vmatpush.msra.mxu0 0.0
      %918 = vmatpush.msra.mxu0 %v853
      %919 = vmatmul.f32.gmra.mxu0 %v861
      %v920 = vpop.f32.mrf.mxu0
      %v921 = vadd.f32 0.0, %v920
      %922 = vdwg.mxu0
      %v923 = vadd.f32 %v843, %v881
      %v924 = vadd.f32 %v844, %v901
      %v925 = vadd.f32 %v845, %v921
      %s926 = scalar_lea.vmem %s280, 64
      %v927 = vld [vmem:[%s926] sm:$0xff]
      %928 = vrot.lane.b32.xlu0 %v298, 90
      %v929 = vpop.permute.xlu0 %928
      %930 = vrot.lane.b32.xlu0 %v299, 90
      %v931 = vpop.permute.xlu0 %930
      %932 = vrot.lane.b32.xlu0 %v300, 90
      %v933 = vpop.permute.xlu0 %932
      %vm934 = vcmask 736256
      %v935 = vsel %vm934, %v929, %v931
      %v936 = vsel %vm934, %v931, %v933
      %v941 = vsel %vm319, %v927, 0
      %943 = vmatpush.msra.mxu0 0.0
      %944 = vmatpush.msra.mxu0 0.0
      %945 = vmatpush.msra.mxu0 0.0
      %946 = vmatpush.msra.mxu0 0.0
      %947 = vmatpush.msra.mxu0 0.0
      %948 = vmatpush.msra.mxu0 0.0
      %949 = vmatpush.msra.mxu0 0.0
      %950 = vmatpush.msra.mxu0 0.0
      %951 = vmatpush.msra.mxu0 0.0
      %952 = vmatpush.msra.mxu0 0.0
      %953 = vmatpush.msra.mxu0 0.0
      %954 = vmatpush.msra.mxu0 0.0
      %955 = vmatpush.msra.mxu0 0.0
      %956 = vmatpush.msra.mxu0 0.0
      %957 = vmatpush.msra.mxu0 0.0
      %958 = vmatpush.msra.mxu0 %v935
      %959 = vmatmul.f32.gmra.mxu0 %v941
      %v960 = vpop.f32.mrf.mxu0
      %v961 = vadd.f32 0.0, %v960
      %962 = vdwg.mxu0
      %963 = vmatpush.msra.mxu0 0.0
      %964 = vmatpush.msra.mxu0 0.0
      %965 = vmatpush.msra.mxu0 0.0
      %966 = vmatpush.msra.mxu0 0.0
      %967 = vmatpush.msra.mxu0 0.0
      %968 = vmatpush.msra.mxu0 0.0
      %969 = vmatpush.msra.mxu0 0.0
      %970 = vmatpush.msra.mxu0 0.0
      %971 = vmatpush.msra.mxu0 0.0
      %972 = vmatpush.msra.mxu0 0.0
      %973 = vmatpush.msra.mxu0 0.0
      %974 = vmatpush.msra.mxu0 0.0
      %975 = vmatpush.msra.mxu0 0.0
      %976 = vmatpush.msra.mxu0 0.0
      %977 = vmatpush.msra.mxu0 0.0
      %978 = vmatpush.msra.mxu0 %v936
      %979 = vmatmul.f32.gmra.mxu0 %v941
      %v980 = vpop.f32.mrf.mxu0
      %v981 = vadd.f32 0.0, %v980
      %982 = vdwg.mxu0
      %983 = vmatpush.msra.mxu0 0.0
      %984 = vmatpush.msra.mxu0 0.0
      %985 = vmatpush.msra.mxu0 0.0
      %986 = vmatpush.msra.mxu0 0.0
      %987 = vmatpush.msra.mxu0 0.0
      %988 = vmatpush.msra.mxu0 0.0
      %989 = vmatpush.msra.mxu0 0.0
      %990 = vmatpush.msra.mxu0 0.0
      %991 = vmatpush.msra.mxu0 0.0
      %992 = vmatpush.msra.mxu0 0.0
      %993 = vmatpush.msra.mxu0 0.0
      %994 = vmatpush.msra.mxu0 0.0
      %995 = vmatpush.msra.mxu0 0.0
      %996 = vmatpush.msra.mxu0 0.0
      %997 = vmatpush.msra.mxu0 0.0
      %998 = vmatpush.msra.mxu0 %v933
      %999 = vmatmul.f32.gmra.mxu0 %v941
      %v1000 = vpop.f32.mrf.mxu0
      %v1001 = vadd.f32 0.0, %v1000
      %1002 = vdwg.mxu0
      %v1003 = vadd.f32 %v923, %v961
      %v1004 = vadd.f32 %v924, %v981
      %v1005 = vadd.f32 %v925, %v1001
      %v1006 = vld [vmem:[%s4] sm:$0x7]
      %v1008 = vperm.slane %v1006, 0
      %v1009 = vperm.slane %v1006, 1
      %v1010 = vperm.slane %v1006, 2
      %v1014 = vmul.f32 %v1003, %v1008
      %v1015 = vmul.f32 %v1004, %v1009
      %v1016 = vmul.f32 %v1005, %v1010
      %v1017 = vadd.f32 %v1014, %v1015
      %vm1018 = vcmask 261120
      %v1019 = vsel %vm1018, %v1016, 0.0
      %v1020 = vadd.f32 %v1017, %v1019
      %1021 = vadd.xlane.f32.xlu0 %v1020
      %v1022 = vpop.xlane.xlu0 %1021
      %v1023 = vmul.f32 %v1014, %v1014
      %v1024 = vmul.f32 %v1015, %v1015
      %v1025 = vmul.f32 %v1016, %v1016
      %v1026 = vadd.f32 %v1023, %v1024
      %v1027 = vsel %vm1018, %v1025, 0.0
      %v1028 = vadd.f32 %v1026, %v1027
      %1029 = vadd.xlane.f32.xlu0 %v1028
      %v1030 = vpop.xlane.xlu0 %1029
      %v1031 = vmul.f32 %v1022, 0.00390625
      %v1032 = vmul.f32 %v1030, 0.00390625
      %v1033 = vmul.f32 %v1031, %v1031
      %v1034 = vsub.f32 %v1032, %v1033
      %v1035 = vmax.f32 %v1034, 0.0
      %v1036 = vld [vmem:[%s284] sm:$0xff]
      %v1037 = vadd.f32 %v1035, 1e-05
      %v1038 = vrsqrt.pop %v1037
      %v1039 = vmul.f32 %v1038, %v1037
      %v1040 = vmul.f32 %v1039, %v1038
      %v1041 = vmul.f32 0.5, %v1040
      %v1042 = vsub.f32 1.5, %v1041
      %v1043 = vmul.f32 %v1038, %v1042
      %vm1044 = vweird.f32 %v1037
      %vm1045 = vweird.f32 %v1038
      %vm1046 = vmor %vm1044, %vm1045
      %v1047 = vsel %vm1046, %v1038, %v1043
      %v1048 = vmul.f32 %v1036, %v1047
      %v1049 = vld [vmem:[%s288] sm:$0xff]
      %v1050 = vmul.f32 %v1031, %v1048
      %v1051 = vsub.f32 %v1049, %v1050
      %1053 = vset.pattern.permute.xlu0 0
      %1054 = vperm.xlu0 %1053, %v1048
      %v1055 = vpop.permute.xlu0 %1054
      %v1057 = vmul.f32 %v1003, %v1055
      %v1058 = vmul.f32 %v1004, %v1055
      %v1059 = vmul.f32 %v1005, %v1055
      %1061 = vset.pattern.permute.xlu0 0
      %1062 = vperm.xlu0 %1061, %v1051
      %v1063 = vpop.permute.xlu0 %1062
      %v1065 = vadd.f32 %v1057, %v1063
      %v1066 = vadd.f32 %v1058, %v1063
      %v1067 = vadd.f32 %v1059, %v1063
      %v1068 = vmax.f32 %v1065, 0.0
      %v1069 = vmax.f32 %v1066, 0.0
      %v1070 = vmax.f32 %v1067, 0.0
      %1071 = vst [vmem:[%s297] sm:$0xff] %v1068
      %1072 = vst [vmem:[%s297 + $0x8] sm:$0xff] %v1069
      %1073 = vst.msk [vmem:[%s297 + $0x10] sm:$0xff] %vm1018, %v1070
      %p1074 = scmp.lt.s32.totalorder %s20, 1
      %s1075 = scalar_select %p1074, %s20, 1
      %p1076 = scmp.lt.s32.totalorder %s21, 0
      %s1077 = scalar_select %p1076, %s21, 0
      %s1078 = smul.addr %s1077, 3
      %s1079 = smul.addr %s1075, 3
      %s1080 = sadd.s32 %s1078, %s1079
      %s1081 = smul.addr %s1080, 8
      %s1082 = scalar_lea.vmem %s5, %s1081
      // Predicated region
      $region41: #{residual_layer_forward.2} parent=39 // pred_check
        %p1083 = pneg %p173
      $region42: #{residual_layer_forward.2} parent=39 // pred_check_branch
        %1085 = sbr.rel (%p1083) target = $region44
      $region43: #{residual_layer_forward.2} parent=39 // pred_region
        _
      $region44: #{residual_layer_forward.2} parent=39 // pred_fallthru
        _
    $region40: #{residual_layer_forward.2} parent=5 // pred_fallthru
      _
    %p1086 = scmp.le.s32.totalorder 2, %s11
    // Predicated region
    $region45: #{residual_layer_forward.2} parent=5 // pred_check
      %p1087 = pneg %p1086
    $region46: #{residual_layer_forward.2} parent=5 // pred_check_branch
      %1089 = sbr.rel (%p1087) target = $region48
    $region47: #{residual_layer_forward.2} parent=5 // pred_region
      %s1090 = ssub.s32 %s11, 2
      // Predicated region
      $region49: #{residual_layer_forward.2} parent=47 // pred_check
        %p1091 = pneg %p179
      $region50: #{residual_layer_forward.2} parent=47 // pred_check_branch
        %1093 = sbr.rel (%p1091) target = $region52
      $region51: #{residual_layer_forward.2} parent=47 // pred_region
        %p1094 = scmp.lt.s32.totalorder %s22, 1
        %s1095 = scalar_select %p1094, %s22, 1
        %p1096 = scmp.lt.s32.totalorder %s23, 0
        %s1097 = scalar_select %p1096, %s23, 0
        %s1098 = smul.addr %s1097, 3
        %s1099 = smul.addr %s1095, 3
        %s1100 = sadd.s32 %s1098, %s1099
        %s1101 = smul.addr %s1100, 8
        %s1102 = scalar_lea.vmem %s5, %s1101
      $region52: #{residual_layer_forward.2} parent=47 // pred_fallthru
        _
    $region48: #{residual_layer_forward.2} parent=5 // pred_fallthru
      _
  $region6: #{residual_layer_forward.2} parent=0 // loop_footer
    %s15 = sadd.s32 1, %s11
  $region7: #{residual_layer_forward.2} parent=0 // loop_footer_branch
    %10 = sbr.rel target = $region3
  $region8: #{residual_layer_forward.2} parent=0 // loop_exit
    _

// kernel: residual_layer_forward.3
$region0: #{residual_layer_forward.3}
  #allocation0 [shape = 'u32[]', space=smem, size = 0x4, offset = 0x4, fixed_abs, tag = 'smem constant byte address 0x4 - core index']
  #allocation1 [shape = 'u32[72,128]{1,0:T(1,128)}', space=vmem, size = 0x9000, scoped, tag = 'internal scratch']
  %s0 = inlined_call_operand.vmem [shape: f32[2,8,384], index: 0, kind: input, shape index: {}]
  %s1 = inlined_call_operand.vmem [shape: f32[9,8,8], index: 1, kind: input, shape index: {}]
  %s2 = inlined_call_operand.vmem [shape: f32[8,1], index: 2, kind: input, shape index: {}]
  %s3 = inlined_call_operand.vmem [shape: f32[8,1], index: 3, kind: input, shape index: {}]
  %s4 = inlined_call_operand.vmem [shape: f32[1,288], index: 4, kind: input, shape index: {}]
  %s5 = inlined_call_operand.vmem [shape: f32[2,8,288], index: 5, kind: input, shape index: {}]
  %s6 = inlined_call_operand.vmem [shape: f32[2,8,288], index: 6, kind: output, shape index: {}]
  %s7 = sld [smem:[#allocation0]]
  $region57: #{residual_layer_forward.3} parent=0
    _
  %s9 = ssub.s32 1, %s7
  %s10 = scalar_select 0, %s9, %s7
  loop: start=0, step=1, limit=4
  $region2: #{residual_layer_forward.3} parent=0 // loop_pre_header
    _
  $region3: #{residual_layer_forward.3} parent=0 // loop_header
    %s12 = sphi 0, %s16
    %p13 = scmp.ge.s32.totalorder %s12, 4
    %s19 = sphi 0, %s31
    %s20 = sphi 0, %s27
    %s21 = sphi 0, %s19
    %s22 = sphi 0, %s20
    %s23 = sphi 0, %s21
    %s24 = sphi 0, %s22
    %s34 = sphi 0, %s36
    %s37 = sphi 0, %s34
    %s38 = sphi 0, %s37
    %s54 = sphi 0, %s38
    %s60 = sphi 0, %s62
    %s63 = sphi 0, %s60
    %s64 = sphi 0, %s63
    %s80 = sphi 0, %s64
    %s86 = sphi 0, %s88
    %s89 = sphi 0, %s86
    %s90 = sphi 0, %s89
    %s106 = sphi 0, %s90
    %s112 = sphi 0, %s114
    %s115 = sphi 0, %s112
    %s116 = sphi 0, %s115
    %s132 = sphi 0, %s116
    %s136 = sphi 0, %s136
    %s138 = sphi 0, %s136
    %s139 = sphi 0, %s138
    %s153 = sphi 0, %s139
    %s161 = sphi 0, %s163
    %s164 = sphi 0, %s161
    %s165 = sphi 0, %s164
    %s181 = sphi 0, %s165
    %s189 = sphi 0, %s191
    %s192 = sphi 0, %s189
    %s193 = sphi 0, %s192
    %s209 = sphi 0, %s193
  $region4: #{residual_layer_forward.3} parent=0 // loop_header_branch
    %15 = sbr.rel (%p13) target = $region8
  $region5: #{residual_layer_forward.3} parent=0 // loop_body
    %s17 = ssub.s32 %s12, 1
    %s18 = ssub.s32 %s12, 2
    %s25 = sadd.s32 1, %s20
    %p26 = scmp.ge.s32.totalorder %s25, 1
    %s27 = scalar_select %p26, 0, %s25
    %s28 = sadd.s32 1, %s19
    %s29 = scalar_select %p26, %s28, %s19
    %p30 = scmp.ge.s32.totalorder %s29, 2
    %s31 = scalar_select %p30, 0, %s29
    %s32 = ssub.s32 %s19, %s31
    %p33 = scmp.eq.s32.totalorder %s32, 0
    %s35 = sadd.s32 %s34, 1
    %s36 = scalar_select %p33, %s34, %s35
    %p39 = pneg %p33
    %p40 = scmp.eq.s32.totalorder %s12, 1
    %p41 = por %p39, %p40
    %p42 = scmp.ne.s32.totalorder %s34, %s37
    %p43 = scmp.eq.s32.totalorder %s12, 0
    %p44 = por %p42, %p43
    %p45 = scmp.ne.s32.totalorder %s34, %s37
    %p46 = scmp.eq.s32.totalorder %s17, 1
    %p47 = por %p45, %p46
    %p48 = scmp.ne.s32.totalorder %s37, %s38
    %p49 = scmp.eq.s32.totalorder %s17, 0
    %p50 = por %p48, %p49
    %p51 = scmp.ne.s32.totalorder %s37, %s38
    %p52 = scmp.eq.s32.totalorder %s18, 1
    %p53 = por %p51, %p52
    %p55 = scmp.ne.s32.totalorder %s38, %s54
    %p56 = scmp.eq.s32.totalorder %s18, 0
    %p57 = por %p55, %p56
    %s58 = ssub.s32 %s20, %s27
    %p59 = scmp.eq.s32.totalorder %s58, 0
    %s61 = sadd.s32 %s60, 1
    %s62 = scalar_select %p59, %s60, %s61
    %p65 = pneg %p59
    %p66 = scmp.eq.s32.totalorder %s12, 1
    %p67 = por %p65, %p66
    %p68 = scmp.ne.s32.totalorder %s60, %s63
    %p69 = scmp.eq.s32.totalorder %s12, 0
    %p70 = por %p68, %p69
    %p71 = scmp.ne.s32.totalorder %s60, %s63
    %p72 = scmp.eq.s32.totalorder %s17, 1
    %p73 = por %p71, %p72
    %p74 = scmp.ne.s32.totalorder %s63, %s64
    %p75 = scmp.eq.s32.totalorder %s17, 0
    %p76 = por %p74, %p75
    %p77 = scmp.ne.s32.totalorder %s63, %s64
    %p78 = scmp.eq.s32.totalorder %s18, 1
    %p79 = por %p77, %p78
    %p81 = scmp.ne.s32.totalorder %s64, %s80
    %p82 = scmp.eq.s32.totalorder %s18, 0
    %p83 = por %p81, %p82
    %s84 = ssub.s32 %s20, %s27
    %p85 = scmp.eq.s32.totalorder %s84, 0
    %s87 = sadd.s32 %s86, 1
    %s88 = scalar_select %p85, %s86, %s87
    %p91 = pneg %p85
    %p92 = scmp.eq.s32.totalorder %s12, 1
    %p93 = por %p91, %p92
    %p94 = scmp.ne.s32.totalorder %s86, %s89
    %p95 = scmp.eq.s32.totalorder %s12, 0
    %p96 = por %p94, %p95
    %p97 = scmp.ne.s32.totalorder %s86, %s89
    %p98 = scmp.eq.s32.totalorder %s17, 1
    %p99 = por %p97, %p98
    %p100 = scmp.ne.s32.totalorder %s89, %s90
    %p101 = scmp.eq.s32.totalorder %s17, 0
    %p102 = por %p100, %p101
    %p103 = scmp.ne.s32.totalorder %s89, %s90
    %p104 = scmp.eq.s32.totalorder %s18, 1
    %p105 = por %p103, %p104
    %p107 = scmp.ne.s32.totalorder %s90, %s106
    %p108 = scmp.eq.s32.totalorder %s18, 0
    %p109 = por %p107, %p108
    %s110 = ssub.s32 %s20, %s27
    %p111 = scmp.eq.s32.totalorder %s110, 0
    %s113 = sadd.s32 %s112, 1
    %s114 = scalar_select %p111, %s112, %s113
    %p117 = pneg %p111
    %p118 = scmp.eq.s32.totalorder %s12, 1
    %p119 = por %p117, %p118
    %p120 = scmp.ne.s32.totalorder %s112, %s115
    %p121 = scmp.eq.s32.totalorder %s12, 0
    %p122 = por %p120, %p121
    %p123 = scmp.ne.s32.totalorder %s112, %s115
    %p124 = scmp.eq.s32.totalorder %s17, 1
    %p125 = por %p123, %p124
    %p126 = scmp.ne.s32.totalorder %s115, %s116
    %p127 = scmp.eq.s32.totalorder %s17, 0
    %p128 = por %p126, %p127
    %p129 = scmp.ne.s32.totalorder %s115, %s116
    %p130 = scmp.eq.s32.totalorder %s18, 1
    %p131 = por %p129, %p130
    %p133 = scmp.ne.s32.totalorder %s116, %s132
    %p134 = scmp.eq.s32.totalorder %s18, 0
    %p135 = por %p133, %p134
    %s137 = sadd.s32 %s136, 1
    %p140 = scmp.eq.s32.totalorder %s12, 1
    %p141 = scmp.ne.s32.totalorder %s136, %s138
    %p142 = scmp.eq.s32.totalorder %s12, 0
    %p143 = por %p141, %p142
    %p144 = scmp.ne.s32.totalorder %s136, %s138
    %p145 = scmp.eq.s32.totalorder %s17, 1
    %p146 = por %p144, %p145
    %p147 = scmp.ne.s32.totalorder %s138, %s139
    %p148 = scmp.eq.s32.totalorder %s17, 0
    %p149 = por %p147, %p148
    %p150 = scmp.ne.s32.totalorder %s138, %s139
    %p151 = scmp.eq.s32.totalorder %s18, 1
    %p152 = por %p150, %p151
    %p154 = scmp.ne.s32.totalorder %s139, %s153
    %p155 = scmp.eq.s32.totalorder %s18, 0
    %p156 = por %p154, %p155
    %s157 = ssub.s32 %s19, %s31
    %s158 = ssub.s32 %s20, %s27
    %s159 = sor.u32 %s157, %s158
    %p160 = scmp.eq.s32.totalorder %s159, 0
    %s162 = sadd.s32 %s161, 1
    %s163 = scalar_select %p160, %s161, %s162
    %p166 = pneg %p160
    %p167 = scmp.eq.s32.totalorder %s12, 1
    %p168 = por %p166, %p167
    %p169 = scmp.ne.s32.totalorder %s161, %s164
    %p170 = scmp.eq.s32.totalorder %s12, 0
    %p171 = por %p169, %p170
    %p172 = scmp.ne.s32.totalorder %s161, %s164
    %p173 = scmp.eq.s32.totalorder %s17, 1
    %p174 = por %p172, %p173
    %p175 = scmp.ne.s32.totalorder %s164, %s165
    %p176 = scmp.eq.s32.totalorder %s17, 0
    %p177 = por %p175, %p176
    %p178 = scmp.ne.s32.totalorder %s164, %s165
    %p179 = scmp.eq.s32.totalorder %s18, 1
    %p180 = por %p178, %p179
    %p182 = scmp.ne.s32.totalorder %s165, %s181
    %p183 = scmp.eq.s32.totalorder %s18, 0
    %p184 = por %p182, %p183
    %s185 = ssub.s32 %s19, %s31
    %s186 = ssub.s32 %s20, %s27
    %s187 = sor.u32 %s185, %s186
    %p188 = scmp.eq.s32.totalorder %s187, 0
    %s190 = sadd.s32 %s189, 1
    %s191 = scalar_select %p188, %s189, %s190
    %p194 = pneg %p188
    %p195 = scmp.eq.s32.totalorder %s12, 1
    %p196 = por %p194, %p195
    %p197 = scmp.ne.s32.totalorder %s189, %s192
    %p198 = scmp.eq.s32.totalorder %s12, 0
    %p199 = por %p197, %p198
    %p200 = scmp.ne.s32.totalorder %s189, %s192
    %p201 = scmp.eq.s32.totalorder %s17, 1
    %p202 = por %p200, %p201
    %p203 = scmp.ne.s32.totalorder %s192, %s193
    %p204 = scmp.eq.s32.totalorder %s17, 0
    %p205 = por %p203, %p204
    %p206 = scmp.ne.s32.totalorder %s192, %s193
    %p207 = scmp.eq.s32.totalorder %s18, 1
    %p208 = por %p206, %p207
    %p210 = scmp.ne.s32.totalorder %s193, %s209
    %p211 = scmp.eq.s32.totalorder %s18, 0
    %p212 = por %p210, %p211
    %p213 = scmp.le.s32.totalorder 1, %s12
    %p214 = scmp.lt.s32.totalorder %s12, 3
    %p215 = pnand %p213, %p214
    %p216 = pneg %p215
    // Predicated region
    $region9: #{residual_layer_forward.3} parent=5 // pred_check
      _
    $region10: #{residual_layer_forward.3} parent=5 // pred_check_branch
      %218 = sbr.rel (%p215) target = $region12
    $region11: #{residual_layer_forward.3} parent=5 // pred_region
      %s219 = ssub.s32 %s12, 1
      // Predicated region
      $region13: #{residual_layer_forward.3} parent=11 // pred_check
        %p220 = pneg %p76
      $region14: #{residual_layer_forward.3} parent=11 // pred_check_branch
        %222 = sbr.rel (%p220) target = $region16
      $region15: #{residual_layer_forward.3} parent=11 // pred_region
        %p223 = scmp.lt.s32.totalorder %s22, 0
        %s224 = scalar_select %p223, %s22, 0
        %s225 = smul.addr %s224, 8
        %s226 = scalar_lea.vmem %s1, %s225
      $region16: #{residual_layer_forward.3} parent=11 // pred_fallthru
        _
      // Predicated region
      $region17: #{residual_layer_forward.3} parent=11 // pred_check
        %p227 = pneg %p102
      $region18: #{residual_layer_forward.3} parent=11 // pred_check_branch
        %229 = sbr.rel (%p227) target = $region20
      $region19: #{residual_layer_forward.3} parent=11 // pred_region
        %p230 = scmp.lt.s32.totalorder %s22, 0
        %s231 = scalar_select %p230, %s22, 0
        %s232 = smul.addr %s231, 8
        %s233 = scalar_lea.vmem %s2, %s232
      $region20: #{residual_layer_forward.3} parent=11 // pred_fallthru
        _
      // Predicated region
      $region21: #{residual_layer_forward.3} parent=11 // pred_check
        %p234 = pneg %p128
      $region22: #{residual_layer_forward.3} parent=11 // pred_check_branch
        %236 = sbr.rel (%p234) target = $region24
      $region23: #{residual_layer_forward.3} parent=11 // pred_region
        %p237 = scmp.lt.s32.totalorder %s22, 0
        %s238 = scalar_select %p237, %s22, 0
        %s239 = smul.addr %s238, 8
        %s240 = scalar_lea.vmem %s3, %s239
      $region24: #{residual_layer_forward.3} parent=11 // pred_fallthru
        _
      // Predicated region
      $region25: #{residual_layer_forward.3} parent=11 // pred_check
        %p241 = pneg %p149
      $region26: #{residual_layer_forward.3} parent=11 // pred_check_branch
        %243 = sbr.rel (%p241) target = $region28
      $region27: #{residual_layer_forward.3} parent=11 // pred_region
        _
      $region28: #{residual_layer_forward.3} parent=11 // pred_fallthru
        _
    $region12: #{residual_layer_forward.3} parent=5 // pred_fallthru
      _
    %p244 = scmp.lt.s32.totalorder %s12, 2
    // Predicated region
    $region29: #{residual_layer_forward.3} parent=5 // pred_check
      %p245 = pneg %p244
    $region30: #{residual_layer_forward.3} parent=5 // pred_check_branch
      %247 = sbr.rel (%p245) target = $region32
    $region31: #{residual_layer_forward.3} parent=5 // pred_region
      // Predicated region
      $region33: #{residual_layer_forward.3} parent=31 // pred_check
        %p248 = pneg %p44
      $region34: #{residual_layer_forward.3} parent=31 // pred_check_branch
        %250 = sbr.rel (%p248) target = $region36
      $region35: #{residual_layer_forward.3} parent=31 // pred_region
        %p251 = scmp.lt.s32.totalorder %s19, 1
        %s252 = scalar_select %p251, %s19, 1
        %s253 = smul.addr %s252, 3
        %s254 = smul.addr %s253, 8
        %s255 = scalar_lea.vmem %s0, %s254
      $region36: #{residual_layer_forward.3} parent=31 // pred_fallthru
        _
      // Predicated region
      $region37: #{residual_layer_forward.3} parent=31 // pred_check
        %p256 = pneg %p171
      $region38: #{residual_layer_forward.3} parent=31 // pred_check_branch
        %258 = sbr.rel (%p256) target = $region40
      $region39: #{residual_layer_forward.3} parent=31 // pred_region
        %p259 = scmp.lt.s32.totalorder %s19, 1
        %s260 = scalar_select %p259, %s19, 1
        %p261 = scmp.lt.s32.totalorder %s20, 0
        %s262 = scalar_select %p261, %s20, 0
        %s263 = smul.addr %s262, 3
        %s264 = smul.addr %s260, 3
        %s265 = sadd.s32 %s263, %s264
        %s266 = smul.addr %s265, 8
        %s267 = scalar_lea.vmem %s5, %s266
      $region40: #{residual_layer_forward.3} parent=31 // pred_fallthru
        _
    $region32: #{residual_layer_forward.3} parent=5 // pred_fallthru
      _
    %p268 = scmp.le.s32.totalorder 1, %s12
    %p269 = scmp.lt.s32.totalorder %s12, 3
    %p270 = pnand %p268, %p269
    %p271 = pneg %p270
    // Predicated region
    $region41: #{residual_layer_forward.3} parent=5 // pred_check
      _
    $region42: #{residual_layer_forward.3} parent=5 // pred_check_branch
      %273 = sbr.rel (%p270) target = $region44
    $region43: #{residual_layer_forward.3} parent=5 // pred_region
      %s274 = ssub.s32 %s12, 1
      %p275 = scmp.lt.s32.totalorder %s21, 1
      %s276 = scalar_select %p275, %s21, 1
      %s277 = smul.addr %s276, 3
      %s278 = smul.addr %s277, 8
      %s279 = scalar_lea.vmem %s0, %s278
      %p280 = pneg %p50
      %p281 = pneg %p47
      %p282 = scmp.lt.s32.totalorder %s22, 0
      %s283 = scalar_select %p282, %s22, 0
      %s284 = smul.addr %s283, 8
      %s285 = scalar_lea.vmem %s1, %s284
      %p286 = pneg %p76
      %p287 = pneg %p73
      %p288 = scmp.lt.s32.totalorder %s22, 0
      %s289 = scalar_select %p288, %s22, 0
      %s290 = smul.addr %s289, 8
      %s291 = scalar_lea.vmem %s2, %s290
      %p292 = pneg %p102
      %p293 = pneg %p99
      %p294 = scmp.lt.s32.totalorder %s22, 0
      %s295 = scalar_select %p294, %s22, 0
      %s296 = smul.addr %s295, 8
      %s297 = scalar_lea.vmem %s3, %s296
      %p298 = pneg %p128
      %p299 = pneg %p125
      %p300 = pneg %p149
      %p301 = pneg %p146
      %p302 = scmp.lt.s32.totalorder %s21, 1
      %s303 = scalar_select %p302, %s21, 1
      %p304 = scmp.lt.s32.totalorder %s22, 0
      %s305 = scalar_select %p304, %s22, 0
      %s306 = smul.addr %s305, 3
      %s307 = smul.addr %s303, 3
      %s308 = sadd.s32 %s306, %s307
      %s309 = smul.addr %s308, 8
      %s310 = scalar_lea.vmem %s5, %s309
      %p311 = pneg %p177
      %p312 = pneg %p174
      %p313 = pneg %p205
      %p314 = pneg %p202
      %p315 = scmp.lt.s32.totalorder %s21, 1
      %s316 = scalar_select %p315, %s21, 1
      %p317 = scmp.lt.s32.totalorder %s22, 0
      %s318 = scalar_select %p317, %s22, 0
      %s319 = smul.addr %s318, 3
      %s320 = smul.addr %s316, 3
      %s321 = sadd.s32 %s319, %s320
      %s322 = smul.addr %s321, 8
      %s323 = scalar_lea.vmem %s6, %s322
      %p324 = scmp.lt.s32.totalorder %s21, 1
      %s325 = scalar_select %p324, %s21, 1
      %s326 = smul.addr %s325, 3
      %s327 = smul.addr %s326, 8
      %s328 = scalar_lea.vmem %s0, %s327
      %p329 = scmp.lt.s32.totalorder %s22, 0
      %s330 = scalar_select %p329, %s22, 0
      %s331 = smul.addr %s330, 8
      %s332 = scalar_lea.vmem %s1, %s331
      %p333 = scmp.lt.s32.totalorder %s22, 0
      %s334 = scalar_select %p333, %s22, 0
      %s335 = smul.addr %s334, 8
      %s336 = scalar_lea.vmem %s2, %s335
      %p337 = scmp.lt.s32.totalorder %s22, 0
      %s338 = scalar_select %p337, %s22, 0
      %s339 = smul.addr %s338, 8
      %s340 = scalar_lea.vmem %s3, %s339
      %p341 = scmp.lt.s32.totalorder %s21, 1
      %s342 = scalar_select %p341, %s21, 1
      %p343 = scmp.lt.s32.totalorder %s22, 0
      %s344 = scalar_select %p343, %s22, 0
      %s345 = smul.addr %s344, 3
      %s346 = smul.addr %s342, 3
      %s347 = sadd.s32 %s345, %s346
      %s348 = smul.addr %s347, 8
      %s349 = scalar_lea.vmem %s5, %s348
      %p350 = scmp.lt.s32.totalorder %s21, 1
      %s351 = scalar_select %p350, %s21, 1
      %p352 = scmp.lt.s32.totalorder %s22, 0
      %s353 = scalar_select %p352, %s22, 0
      %s354 = smul.addr %s353, 3
      %s355 = smul.addr %s351, 3
      %s356 = sadd.s32 %s354, %s355
      %s357 = smul.addr %s356, 8
      %s358 = scalar_lea.vmem %s6, %s357
      %v359 = vld [vmem:[%s328] sm:$0xff]
      %v360 = vld [vmem:[%s328 + $0x8] sm:$0xff]
      %v361 = vld [vmem:[%s328 + $0x10] sm:$0xff]
      %v362 = vld [vmem:[%s332] sm:$0xff]
      %s363 = scalar_lea.vmem %s332, 8
      %v364 = vld [vmem:[%s363] sm:$0xff]
      %368 = vrot.lane.b32.xlu0 %v359, 127
      %v369 = vpop.permute.xlu0 %368
      %370 = vrot.lane.b32.xlu0 %v360, 127
      %v371 = vpop.permute.xlu0 %370
      %372 = vrot.lane.b32.xlu0 %v361, 127
      %v373 = vpop.permute.xlu0 %372
      %vm374 = vcmask 1039360
      %v375 = vsel %vm374, %v369, %v371
      %v376 = vsel %vm374, %v371, %v373
      %vm380 = vcmask 64512
      %v382 = vsel %vm380, %v364, 0
      %384 = vmatpush.msra.mxu0 0.0
      %385 = vmatpush.msra.mxu0 0.0
      %386 = vmatpush.msra.mxu0 0.0
      %387 = vmatpush.msra.mxu0 0.0
      %388 = vmatpush.msra.mxu0 0.0
      %389 = vmatpush.msra.mxu0 0.0
      %390 = vmatpush.msra.mxu0 0.0
      %391 = vmatpush.msra.mxu0 0.0
      %392 = vmatpush.msra.mxu0 0.0
      %393 = vmatpush.msra.mxu0 0.0
      %394 = vmatpush.msra.mxu0 0.0
      %395 = vmatpush.msra.mxu0 0.0
      %396 = vmatpush.msra.mxu0 0.0
      %397 = vmatpush.msra.mxu0 0.0
      %398 = vmatpush.msra.mxu0 0.0
      %399 = vmatpush.msra.mxu0 %v375
      %400 = vmatmul.f32.gmra.mxu0 %v382
      %v401 = vpop.f32.mrf.mxu0
      %v402 = vadd.f32 0.0, %v401
      %403 = vdwg.mxu0
      %404 = vmatpush.msra.mxu0 0.0
      %405 = vmatpush.msra.mxu0 0.0
      %406 = vmatpush.msra.mxu0 0.0
      %407 = vmatpush.msra.mxu0 0.0
      %408 = vmatpush.msra.mxu0 0.0
      %409 = vmatpush.msra.mxu0 0.0
      %410 = vmatpush.msra.mxu0 0.0
      %411 = vmatpush.msra.mxu0 0.0
      %412 = vmatpush.msra.mxu0 0.0
      %413 = vmatpush.msra.mxu0 0.0
      %414 = vmatpush.msra.mxu0 0.0
      %415 = vmatpush.msra.mxu0 0.0
      %416 = vmatpush.msra.mxu0 0.0
      %417 = vmatpush.msra.mxu0 0.0
      %418 = vmatpush.msra.mxu0 0.0
      %419 = vmatpush.msra.mxu0 %v376
      %420 = vmatmul.f32.gmra.mxu0 %v382
      %v421 = vpop.f32.mrf.mxu0
      %v422 = vadd.f32 0.0, %v421
      %423 = vdwg.mxu0
      %424 = vmatpush.msra.mxu0 0.0
      %425 = vmatpush.msra.mxu0 0.0
      %426 = vmatpush.msra.mxu0 0.0
      %427 = vmatpush.msra.mxu0 0.0
      %428 = vmatpush.msra.mxu0 0.0
      %429 = vmatpush.msra.mxu0 0.0
      %430 = vmatpush.msra.mxu0 0.0
      %431 = vmatpush.msra.mxu0 0.0
      %432 = vmatpush.msra.mxu0 0.0
      %433 = vmatpush.msra.mxu0 0.0
      %434 = vmatpush.msra.mxu0 0.0
      %435 = vmatpush.msra.mxu0 0.0
      %436 = vmatpush.msra.mxu0 0.0
      %437 = vmatpush.msra.mxu0 0.0
      %438 = vmatpush.msra.mxu0 0.0
      %439 = vmatpush.msra.mxu0 %v373
      %440 = vmatmul.f32.gmra.mxu0 %v382
      %v441 = vpop.f32.mrf.mxu0
      %v442 = vadd.f32 0.0, %v441
      %443 = vdwg.mxu0
      %v445 = vsel %vm380, %v362, 0
      %447 = vmatpush.msra.mxu0 0.0
      %448 = vmatpush.msra.mxu0 0.0
      %449 = vmatpush.msra.mxu0 0.0
      %450 = vmatpush.msra.mxu0 0.0
      %451 = vmatpush.msra.mxu0 0.0
      %452 = vmatpush.msra.mxu0 0.0
      %453 = vmatpush.msra.mxu0 0.0
      %454 = vmatpush.msra.mxu0 0.0
      %455 = vmatpush.msra.mxu0 0.0
      %456 = vmatpush.msra.mxu0 0.0
      %457 = vmatpush.msra.mxu0 0.0
      %458 = vmatpush.msra.mxu0 0.0
      %459 = vmatpush.msra.mxu0 0.0
      %460 = vmatpush.msra.mxu0 0.0
      %461 = vmatpush.msra.mxu0 0.0
      %462 = vmatpush.msra.mxu0 %v359
      %463 = vmatmul.f32.gmra.mxu0 %v445
      %v464 = vpop.f32.mrf.mxu0
      %v465 = vadd.f32 %v402, %v464
      %466 = vdwg.mxu0
      %467 = vmatpush.msra.mxu0 0.0
      %468 = vmatpush.msra.mxu0 0.0
      %469 = vmatpush.msra.mxu0 0.0
      %470 = vmatpush.msra.mxu0 0.0
      %471 = vmatpush.msra.mxu0 0.0
      %472 = vmatpush.msra.mxu0 0.0
      %473 = vmatpush.msra.mxu0 0.0
      %474 = vmatpush.msra.mxu0 0.0
      %475 = vmatpush.msra.mxu0 0.0
      %476 = vmatpush.msra.mxu0 0.0
      %477 = vmatpush.msra.mxu0 0.0
      %478 = vmatpush.msra.mxu0 0.0
      %479 = vmatpush.msra.mxu0 0.0
      %480 = vmatpush.msra.mxu0 0.0
      %481 = vmatpush.msra.mxu0 0.0
      %482 = vmatpush.msra.mxu0 %v360
      %483 = vmatmul.f32.gmra.mxu0 %v445
      %v484 = vpop.f32.mrf.mxu0
      %v485 = vadd.f32 %v422, %v484
      %486 = vdwg.mxu0
      %487 = vmatpush.msra.mxu0 0.0
      %488 = vmatpush.msra.mxu0 0.0
      %489 = vmatpush.msra.mxu0 0.0
      %490 = vmatpush.msra.mxu0 0.0
      %491 = vmatpush.msra.mxu0 0.0
      %492 = vmatpush.msra.mxu0 0.0
      %493 = vmatpush.msra.mxu0 0.0
      %494 = vmatpush.msra.mxu0 0.0
      %495 = vmatpush.msra.mxu0 0.0
      %496 = vmatpush.msra.mxu0 0.0
      %497 = vmatpush.msra.mxu0 0.0
      %498 = vmatpush.msra.mxu0 0.0
      %499 = vmatpush.msra.mxu0 0.0
      %500 = vmatpush.msra.mxu0 0.0
      %501 = vmatpush.msra.mxu0 0.0
      %502 = vmatpush.msra.mxu0 %v361
      %503 = vmatmul.f32.gmra.mxu0 %v445
      %v504 = vpop.f32.mrf.mxu0
      %v505 = vadd.f32 %v442, %v504
      %506 = vdwg.mxu0
      %s507 = scalar_lea.vmem %s332, 16
      %v508 = vld [vmem:[%s507] sm:$0xff]
      %509 = vrot.lane.b32.xlu0 %v359, 126
      %v510 = vpop.permute.xlu0 %509
      %511 = vrot.lane.b32.xlu0 %v360, 126
      %v512 = vpop.permute.xlu0 %511
      %513 = vrot.lane.b32.xlu0 %v361, 126
      %v514 = vpop.permute.xlu0 %513
      %vm515 = vcmask 1031168
      %v516 = vsel %vm515, %v510, %v512
      %v517 = vsel %vm515, %v512, %v514
      %v522 = vsel %vm380, %v508, 0
      %524 = vmatpush.msra.mxu0 0.0
      %525 = vmatpush.msra.mxu0 0.0
      %526 = vmatpush.msra.mxu0 0.0
      %527 = vmatpush.msra.mxu0 0.0
      %528 = vmatpush.msra.mxu0 0.0
      %529 = vmatpush.msra.mxu0 0.0
      %530 = vmatpush.msra.mxu0 0.0
      %531 = vmatpush.msra.mxu0 0.0
      %532 = vmatpush.msra.mxu0 0.0
      %533 = vmatpush.msra.mxu0 0.0
      %534 = vmatpush.msra.mxu0 0.0
      %535 = vmatpush.msra.mxu0 0.0
      %536 = vmatpush.msra.mxu0 0.0
      %537 = vmatpush.msra.mxu0 0.0
      %538 = vmatpush.msra.mxu0 0.0
      %539 = vmatpush.msra.mxu0 %v516
      %540 = vmatmul.f32.gmra.mxu0 %v522
      %v541 = vpop.f32.mrf.mxu0
      %v542 = vadd.f32 0.0, %v541
      %543 = vdwg.mxu0
      %544 = vmatpush.msra.mxu0 0.0
      %545 = vmatpush.msra.mxu0 0.0
      %546 = vmatpush.msra.mxu0 0.0
      %547 = vmatpush.msra.mxu0 0.0
      %548 = vmatpush.msra.mxu0 0.0
      %549 = vmatpush.msra.mxu0 0.0
      %550 = vmatpush.msra.mxu0 0.0
      %551 = vmatpush.msra.mxu0 0.0
      %552 = vmatpush.msra.mxu0 0.0
      %553 = vmatpush.msra.mxu0 0.0
      %554 = vmatpush.msra.mxu0 0.0
      %555 = vmatpush.msra.mxu0 0.0
      %556 = vmatpush.msra.mxu0 0.0
      %557 = vmatpush.msra.mxu0 0.0
      %558 = vmatpush.msra.mxu0 0.0
      %559 = vmatpush.msra.mxu0 %v517
      %560 = vmatmul.f32.gmra.mxu0 %v522
      %v561 = vpop.f32.mrf.mxu0
      %v562 = vadd.f32 0.0, %v561
      %563 = vdwg.mxu0
      %564 = vmatpush.msra.mxu0 0.0
      %565 = vmatpush.msra.mxu0 0.0
      %566 = vmatpush.msra.mxu0 0.0
      %567 = vmatpush.msra.mxu0 0.0
      %568 = vmatpush.msra.mxu0 0.0
      %569 = vmatpush.msra.mxu0 0.0
      %570 = vmatpush.msra.mxu0 0.0
      %571 = vmatpush.msra.mxu0 0.0
      %572 = vmatpush.msra.mxu0 0.0
      %573 = vmatpush.msra.mxu0 0.0
      %574 = vmatpush.msra.mxu0 0.0
      %575 = vmatpush.msra.mxu0 0.0
      %576 = vmatpush.msra.mxu0 0.0
      %577 = vmatpush.msra.mxu0 0.0
      %578 = vmatpush.msra.mxu0 0.0
      %579 = vmatpush.msra.mxu0 %v514
      %580 = vmatmul.f32.gmra.mxu0 %v522
      %v581 = vpop.f32.mrf.mxu0
      %v582 = vadd.f32 0.0, %v581
      %583 = vdwg.mxu0
      %v584 = vadd.f32 %v465, %v542
      %v585 = vadd.f32 %v485, %v562
      %v586 = vadd.f32 %v505, %v582
      %s587 = scalar_lea.vmem %s332, 24
      %v588 = vld [vmem:[%s587] sm:$0xff]
      %589 = vrot.lane.b32.xlu0 %v359, 110
      %v590 = vpop.permute.xlu0 %589
      %591 = vrot.lane.b32.xlu0 %v360, 110
      %v592 = vpop.permute.xlu0 %591
      %593 = vrot.lane.b32.xlu0 %v361, 110
      %v594 = vpop.permute.xlu0 %593
      %vm595 = vcmask 900096
      %v596 = vsel %vm595, %v590, %v592
      %v597 = vsel %vm595, %v592, %v594
      %v602 = vsel %vm380, %v588, 0
      %604 = vmatpush.msra.mxu0 0.0
      %605 = vmatpush.msra.mxu0 0.0
      %606 = vmatpush.msra.mxu0 0.0
      %607 = vmatpush.msra.mxu0 0.0
      %608 = vmatpush.msra.mxu0 0.0
      %609 = vmatpush.msra.mxu0 0.0
      %610 = vmatpush.msra.mxu0 0.0
      %611 = vmatpush.msra.mxu0 0.0
      %612 = vmatpush.msra.mxu0 0.0
      %613 = vmatpush.msra.mxu0 0.0
      %614 = vmatpush.msra.mxu0 0.0
      %615 = vmatpush.msra.mxu0 0.0
      %616 = vmatpush.msra.mxu0 0.0
      %617 = vmatpush.msra.mxu0 0.0
      %618 = vmatpush.msra.mxu0 0.0
      %619 = vmatpush.msra.mxu0 %v596
      %620 = vmatmul.f32.gmra.mxu0 %v602
      %v621 = vpop.f32.mrf.mxu0
      %v622 = vadd.f32 0.0, %v621
      %623 = vdwg.mxu0
      %624 = vmatpush.msra.mxu0 0.0
      %625 = vmatpush.msra.mxu0 0.0
      %626 = vmatpush.msra.mxu0 0.0
      %627 = vmatpush.msra.mxu0 0.0
      %628 = vmatpush.msra.mxu0 0.0
      %629 = vmatpush.msra.mxu0 0.0
      %630 = vmatpush.msra.mxu0 0.0
      %631 = vmatpush.msra.mxu0 0.0
      %632 = vmatpush.msra.mxu0 0.0
      %633 = vmatpush.msra.mxu0 0.0
      %634 = vmatpush.msra.mxu0 0.0
      %635 = vmatpush.msra.mxu0 0.0
      %636 = vmatpush.msra.mxu0 0.0
      %637 = vmatpush.msra.mxu0 0.0
      %638 = vmatpush.msra.mxu0 0.0
      %639 = vmatpush.msra.mxu0 %v597
      %640 = vmatmul.f32.gmra.mxu0 %v602
      %v641 = vpop.f32.mrf.mxu0
      %v642 = vadd.f32 0.0, %v641
      %643 = vdwg.mxu0
      %644 = vmatpush.msra.mxu0 0.0
      %645 = vmatpush.msra.mxu0 0.0
      %646 = vmatpush.msra.mxu0 0.0
      %647 = vmatpush.msra.mxu0 0.0
      %648 = vmatpush.msra.mxu0 0.0
      %649 = vmatpush.msra.mxu0 0.0
      %650 = vmatpush.msra.mxu0 0.0
      %651 = vmatpush.msra.mxu0 0.0
      %652 = vmatpush.msra.mxu0 0.0
      %653 = vmatpush.msra.mxu0 0.0
      %654 = vmatpush.msra.mxu0 0.0
      %655 = vmatpush.msra.mxu0 0.0
      %656 = vmatpush.msra.mxu0 0.0
      %657 = vmatpush.msra.mxu0 0.0
      %658 = vmatpush.msra.mxu0 0.0
      %659 = vmatpush.msra.mxu0 %v594
      %660 = vmatmul.f32.gmra.mxu0 %v602
      %v661 = vpop.f32.mrf.mxu0
      %v662 = vadd.f32 0.0, %v661
      %663 = vdwg.mxu0
      %v664 = vadd.f32 %v584, %v622
      %v665 = vadd.f32 %v585, %v642
      %v666 = vadd.f32 %v586, %v662
      %s667 = scalar_lea.vmem %s332, 32
      %v668 = vld [vmem:[%s667] sm:$0xff]
      %669 = vrot.lane.b32.xlu0 %v359, 109
      %v670 = vpop.permute.xlu0 %669
      %671 = vrot.lane.b32.xlu0 %v360, 109
      %v672 = vpop.permute.xlu0 %671
      %673 = vrot.lane.b32.xlu0 %v361, 109
      %v674 = vpop.permute.xlu0 %673
      %vm675 = vcmask 891904
      %v676 = vsel %vm675, %v670, %v672
      %v677 = vsel %vm675, %v672, %v674
      %v682 = vsel %vm380, %v668, 0
      %684 = vmatpush.msra.mxu0 0.0
      %685 = vmatpush.msra.mxu0 0.0
      %686 = vmatpush.msra.mxu0 0.0
      %687 = vmatpush.msra.mxu0 0.0
      %688 = vmatpush.msra.mxu0 0.0
      %689 = vmatpush.msra.mxu0 0.0
      %690 = vmatpush.msra.mxu0 0.0
      %691 = vmatpush.msra.mxu0 0.0
      %692 = vmatpush.msra.mxu0 0.0
      %693 = vmatpush.msra.mxu0 0.0
      %694 = vmatpush.msra.mxu0 0.0
      %695 = vmatpush.msra.mxu0 0.0
      %696 = vmatpush.msra.mxu0 0.0
      %697 = vmatpush.msra.mxu0 0.0
      %698 = vmatpush.msra.mxu0 0.0
      %699 = vmatpush.msra.mxu0 %v676
      %700 = vmatmul.f32.gmra.mxu0 %v682
      %v701 = vpop.f32.mrf.mxu0
      %v702 = vadd.f32 0.0, %v701
      %703 = vdwg.mxu0
      %704 = vmatpush.msra.mxu0 0.0
      %705 = vmatpush.msra.mxu0 0.0
      %706 = vmatpush.msra.mxu0 0.0
      %707 = vmatpush.msra.mxu0 0.0
      %708 = vmatpush.msra.mxu0 0.0
      %709 = vmatpush.msra.mxu0 0.0
      %710 = vmatpush.msra.mxu0 0.0
      %711 = vmatpush.msra.mxu0 0.0
      %712 = vmatpush.msra.mxu0 0.0
      %713 = vmatpush.msra.mxu0 0.0
      %714 = vmatpush.msra.mxu0 0.0
      %715 = vmatpush.msra.mxu0 0.0
      %716 = vmatpush.msra.mxu0 0.0
      %717 = vmatpush.msra.mxu0 0.0
      %718 = vmatpush.msra.mxu0 0.0
      %719 = vmatpush.msra.mxu0 %v677
      %720 = vmatmul.f32.gmra.mxu0 %v682
      %v721 = vpop.f32.mrf.mxu0
      %v722 = vadd.f32 0.0, %v721
      %723 = vdwg.mxu0
      %724 = vmatpush.msra.mxu0 0.0
      %725 = vmatpush.msra.mxu0 0.0
      %726 = vmatpush.msra.mxu0 0.0
      %727 = vmatpush.msra.mxu0 0.0
      %728 = vmatpush.msra.mxu0 0.0
      %729 = vmatpush.msra.mxu0 0.0
      %730 = vmatpush.msra.mxu0 0.0
      %731 = vmatpush.msra.mxu0 0.0
      %732 = vmatpush.msra.mxu0 0.0
      %733 = vmatpush.msra.mxu0 0.0
      %734 = vmatpush.msra.mxu0 0.0
      %735 = vmatpush.msra.mxu0 0.0
      %736 = vmatpush.msra.mxu0 0.0
      %737 = vmatpush.msra.mxu0 0.0
      %738 = vmatpush.msra.mxu0 0.0
      %739 = vmatpush.msra.mxu0 %v674
      %740 = vmatmul.f32.gmra.mxu0 %v682
      %v741 = vpop.f32.mrf.mxu0
      %v742 = vadd.f32 0.0, %v741
      %743 = vdwg.mxu0
      %v744 = vadd.f32 %v664, %v702
      %v745 = vadd.f32 %v665, %v722
      %v746 = vadd.f32 %v666, %v742
      %s747 = scalar_lea.vmem %s332, 40
      %v748 = vld [vmem:[%s747] sm:$0xff]
      %749 = vrot.lane.b32.xlu0 %v359, 108
      %v750 = vpop.permute.xlu0 %749
      %751 = vrot.lane.b32.xlu0 %v360, 108
      %v752 = vpop.permute.xlu0 %751
      %753 = vrot.lane.b32.xlu0 %v361, 108
      %v754 = vpop.permute.xlu0 %753
      %vm755 = vcmask 883712
      %v756 = vsel %vm755, %v750, %v752
      %v757 = vsel %vm755, %v752, %v754
      %v762 = vsel %vm380, %v748, 0
      %764 = vmatpush.msra.mxu0 0.0
      %765 = vmatpush.msra.mxu0 0.0
      %766 = vmatpush.msra.mxu0 0.0
      %767 = vmatpush.msra.mxu0 0.0
      %768 = vmatpush.msra.mxu0 0.0
      %769 = vmatpush.msra.mxu0 0.0
      %770 = vmatpush.msra.mxu0 0.0
      %771 = vmatpush.msra.mxu0 0.0
      %772 = vmatpush.msra.mxu0 0.0
      %773 = vmatpush.msra.mxu0 0.0
      %774 = vmatpush.msra.mxu0 0.0
      %775 = vmatpush.msra.mxu0 0.0
      %776 = vmatpush.msra.mxu0 0.0
      %777 = vmatpush.msra.mxu0 0.0
      %778 = vmatpush.msra.mxu0 0.0
      %779 = vmatpush.msra.mxu0 %v756
      %780 = vmatmul.f32.gmra.mxu0 %v762
      %v781 = vpop.f32.mrf.mxu0
      %v782 = vadd.f32 0.0, %v781
      %783 = vdwg.mxu0
      %784 = vmatpush.msra.mxu0 0.0
      %785 = vmatpush.msra.mxu0 0.0
      %786 = vmatpush.msra.mxu0 0.0
      %787 = vmatpush.msra.mxu0 0.0
      %788 = vmatpush.msra.mxu0 0.0
      %789 = vmatpush.msra.mxu0 0.0
      %790 = vmatpush.msra.mxu0 0.0
      %791 = vmatpush.msra.mxu0 0.0
      %792 = vmatpush.msra.mxu0 0.0
      %793 = vmatpush.msra.mxu0 0.0
      %794 = vmatpush.msra.mxu0 0.0
      %795 = vmatpush.msra.mxu0 0.0
      %796 = vmatpush.msra.mxu0 0.0
      %797 = vmatpush.msra.mxu0 0.0
      %798 = vmatpush.msra.mxu0 0.0
      %799 = vmatpush.msra.mxu0 %v757
      %800 = vmatmul.f32.gmra.mxu0 %v762
      %v801 = vpop.f32.mrf.mxu0
      %v802 = vadd.f32 0.0, %v801
      %803 = vdwg.mxu0
      %804 = vmatpush.msra.mxu0 0.0
      %805 = vmatpush.msra.mxu0 0.0
      %806 = vmatpush.msra.mxu0 0.0
      %807 = vmatpush.msra.mxu0 0.0
      %808 = vmatpush.msra.mxu0 0.0
      %809 = vmatpush.msra.mxu0 0.0
      %810 = vmatpush.msra.mxu0 0.0
      %811 = vmatpush.msra.mxu0 0.0
      %812 = vmatpush.msra.mxu0 0.0
      %813 = vmatpush.msra.mxu0 0.0
      %814 = vmatpush.msra.mxu0 0.0
      %815 = vmatpush.msra.mxu0 0.0
      %816 = vmatpush.msra.mxu0 0.0
      %817 = vmatpush.msra.mxu0 0.0
      %818 = vmatpush.msra.mxu0 0.0
      %819 = vmatpush.msra.mxu0 %v754
      %820 = vmatmul.f32.gmra.mxu0 %v762
      %v821 = vpop.f32.mrf.mxu0
      %v822 = vadd.f32 0.0, %v821
      %823 = vdwg.mxu0
      %v824 = vadd.f32 %v744, %v782
      %v825 = vadd.f32 %v745, %v802
      %v826 = vadd.f32 %v746, %v822
      %s827 = scalar_lea.vmem %s332, 48
      %v828 = vld [vmem:[%s827] sm:$0xff]
      %829 = vrot.lane.b32.xlu0 %v359, 92
      %v830 = vpop.permute.xlu0 %829
      %831 = vrot.lane.b32.xlu0 %v360, 92
      %v832 = vpop.permute.xlu0 %831
      %833 = vrot.lane.b32.xlu0 %v361, 92
      %v834 = vpop.permute.xlu0 %833
      %vm835 = vcmask 752640
      %v836 = vsel %vm835, %v830, %v832
      %v837 = vsel %vm835, %v832, %v834
      %v842 = vsel %vm380, %v828, 0
      %844 = vmatpush.msra.mxu0 0.0
      %845 = vmatpush.msra.mxu0 0.0
      %846 = vmatpush.msra.mxu0 0.0
      %847 = vmatpush.msra.mxu0 0.0
      %848 = vmatpush.msra.mxu0 0.0
      %849 = vmatpush.msra.mxu0 0.0
      %850 = vmatpush.msra.mxu0 0.0
      %851 = vmatpush.msra.mxu0 0.0
      %852 = vmatpush.msra.mxu0 0.0
      %853 = vmatpush.msra.mxu0 0.0
      %854 = vmatpush.msra.mxu0 0.0
      %855 = vmatpush.msra.mxu0 0.0
      %856 = vmatpush.msra.mxu0 0.0
      %857 = vmatpush.msra.mxu0 0.0
      %858 = vmatpush.msra.mxu0 0.0
      %859 = vmatpush.msra.mxu0 %v836
      %860 = vmatmul.f32.gmra.mxu0 %v842
      %v861 = vpop.f32.mrf.mxu0
      %v862 = vadd.f32 0.0, %v861
      %863 = vdwg.mxu0
      %864 = vmatpush.msra.mxu0 0.0
      %865 = vmatpush.msra.mxu0 0.0
      %866 = vmatpush.msra.mxu0 0.0
      %867 = vmatpush.msra.mxu0 0.0
      %868 = vmatpush.msra.mxu0 0.0
      %869 = vmatpush.msra.mxu0 0.0
      %870 = vmatpush.msra.mxu0 0.0
      %871 = vmatpush.msra.mxu0 0.0
      %872 = vmatpush.msra.mxu0 0.0
      %873 = vmatpush.msra.mxu0 0.0
      %874 = vmatpush.msra.mxu0 0.0
      %875 = vmatpush.msra.mxu0 0.0
      %876 = vmatpush.msra.mxu0 0.0
      %877 = vmatpush.msra.mxu0 0.0
      %878 = vmatpush.msra.mxu0 0.0
      %879 = vmatpush.msra.mxu0 %v837
      %880 = vmatmul.f32.gmra.mxu0 %v842
      %v881 = vpop.f32.mrf.mxu0
      %v882 = vadd.f32 0.0, %v881
      %883 = vdwg.mxu0
      %884 = vmatpush.msra.mxu0 0.0
      %885 = vmatpush.msra.mxu0 0.0
      %886 = vmatpush.msra.mxu0 0.0
      %887 = vmatpush.msra.mxu0 0.0
      %888 = vmatpush.msra.mxu0 0.0
      %889 = vmatpush.msra.mxu0 0.0
      %890 = vmatpush.msra.mxu0 0.0
      %891 = vmatpush.msra.mxu0 0.0
      %892 = vmatpush.msra.mxu0 0.0
      %893 = vmatpush.msra.mxu0 0.0
      %894 = vmatpush.msra.mxu0 0.0
      %895 = vmatpush.msra.mxu0 0.0
      %896 = vmatpush.msra.mxu0 0.0
      %897 = vmatpush.msra.mxu0 0.0
      %898 = vmatpush.msra.mxu0 0.0
      %899 = vmatpush.msra.mxu0 %v834
      %900 = vmatmul.f32.gmra.mxu0 %v842
      %v901 = vpop.f32.mrf.mxu0
      %v902 = vadd.f32 0.0, %v901
      %903 = vdwg.mxu0
      %v904 = vadd.f32 %v824, %v862
      %v905 = vadd.f32 %v825, %v882
      %v906 = vadd.f32 %v826, %v902
      %s907 = scalar_lea.vmem %s332, 56
      %v908 = vld [vmem:[%s907] sm:$0xff]
      %909 = vrot.lane.b32.xlu0 %v359, 91
      %v910 = vpop.permute.xlu0 %909
      %911 = vrot.lane.b32.xlu0 %v360, 91
      %v912 = vpop.permute.xlu0 %911
      %913 = vrot.lane.b32.xlu0 %v361, 91
      %v914 = vpop.permute.xlu0 %913
      %vm915 = vcmask 744448
      %v916 = vsel %vm915, %v910, %v912
      %v917 = vsel %vm915, %v912, %v914
      %v922 = vsel %vm380, %v908, 0
      %924 = vmatpush.msra.mxu0 0.0
      %925 = vmatpush.msra.mxu0 0.0
      %926 = vmatpush.msra.mxu0 0.0
      %927 = vmatpush.msra.mxu0 0.0
      %928 = vmatpush.msra.mxu0 0.0
      %929 = vmatpush.msra.mxu0 0.0
      %930 = vmatpush.msra.mxu0 0.0
      %931 = vmatpush.msra.mxu0 0.0
      %932 = vmatpush.msra.mxu0 0.0
      %933 = vmatpush.msra.mxu0 0.0
      %934 = vmatpush.msra.mxu0 0.0
      %935 = vmatpush.msra.mxu0 0.0
      %936 = vmatpush.msra.mxu0 0.0
      %937 = vmatpush.msra.mxu0 0.0
      %938 = vmatpush.msra.mxu0 0.0
      %939 = vmatpush.msra.mxu0 %v916
      %940 = vmatmul.f32.gmra.mxu0 %v922
      %v941 = vpop.f32.mrf.mxu0
      %v942 = vadd.f32 0.0, %v941
      %943 = vdwg.mxu0
      %944 = vmatpush.msra.mxu0 0.0
      %945 = vmatpush.msra.mxu0 0.0
      %946 = vmatpush.msra.mxu0 0.0
      %947 = vmatpush.msra.mxu0 0.0
      %948 = vmatpush.msra.mxu0 0.0
      %949 = vmatpush.msra.mxu0 0.0
      %950 = vmatpush.msra.mxu0 0.0
      %951 = vmatpush.msra.mxu0 0.0
      %952 = vmatpush.msra.mxu0 0.0
      %953 = vmatpush.msra.mxu0 0.0
      %954 = vmatpush.msra.mxu0 0.0
      %955 = vmatpush.msra.mxu0 0.0
      %956 = vmatpush.msra.mxu0 0.0
      %957 = vmatpush.msra.mxu0 0.0
      %958 = vmatpush.msra.mxu0 0.0
      %959 = vmatpush.msra.mxu0 %v917
      %960 = vmatmul.f32.gmra.mxu0 %v922
      %v961 = vpop.f32.mrf.mxu0
      %v962 = vadd.f32 0.0, %v961
      %963 = vdwg.mxu0
      %964 = vmatpush.msra.mxu0 0.0
      %965 = vmatpush.msra.mxu0 0.0
      %966 = vmatpush.msra.mxu0 0.0
      %967 = vmatpush.msra.mxu0 0.0
      %968 = vmatpush.msra.mxu0 0.0
      %969 = vmatpush.msra.mxu0 0.0
      %970 = vmatpush.msra.mxu0 0.0
      %971 = vmatpush.msra.mxu0 0.0
      %972 = vmatpush.msra.mxu0 0.0
      %973 = vmatpush.msra.mxu0 0.0
      %974 = vmatpush.msra.mxu0 0.0
      %975 = vmatpush.msra.mxu0 0.0
      %976 = vmatpush.msra.mxu0 0.0
      %977 = vmatpush.msra.mxu0 0.0
      %978 = vmatpush.msra.mxu0 0.0
      %979 = vmatpush.msra.mxu0 %v914
      %980 = vmatmul.f32.gmra.mxu0 %v922
      %v981 = vpop.f32.mrf.mxu0
      %v982 = vadd.f32 0.0, %v981
      %983 = vdwg.mxu0
      %v984 = vadd.f32 %v904, %v942
      %v985 = vadd.f32 %v905, %v962
      %v986 = vadd.f32 %v906, %v982
      %s987 = scalar_lea.vmem %s332, 64
      %v988 = vld [vmem:[%s987] sm:$0xff]
      %989 = vrot.lane.b32.xlu0 %v359, 90
      %v990 = vpop.permute.xlu0 %989
      %991 = vrot.lane.b32.xlu0 %v360, 90
      %v992 = vpop.permute.xlu0 %991
      %993 = vrot.lane.b32.xlu0 %v361, 90
      %v994 = vpop.permute.xlu0 %993
      %vm995 = vcmask 736256
      %v996 = vsel %vm995, %v990, %v992
      %v997 = vsel %vm995, %v992, %v994
      %v1002 = vsel %vm380, %v988, 0
      %1004 = vmatpush.msra.mxu0 0.0
      %1005 = vmatpush.msra.mxu0 0.0
      %1006 = vmatpush.msra.mxu0 0.0
      %1007 = vmatpush.msra.mxu0 0.0
      %1008 = vmatpush.msra.mxu0 0.0
      %1009 = vmatpush.msra.mxu0 0.0
      %1010 = vmatpush.msra.mxu0 0.0
      %1011 = vmatpush.msra.mxu0 0.0
      %1012 = vmatpush.msra.mxu0 0.0
      %1013 = vmatpush.msra.mxu0 0.0
      %1014 = vmatpush.msra.mxu0 0.0
      %1015 = vmatpush.msra.mxu0 0.0
      %1016 = vmatpush.msra.mxu0 0.0
      %1017 = vmatpush.msra.mxu0 0.0
      %1018 = vmatpush.msra.mxu0 0.0
      %1019 = vmatpush.msra.mxu0 %v996
      %1020 = vmatmul.f32.gmra.mxu0 %v1002
      %v1021 = vpop.f32.mrf.mxu0
      %v1022 = vadd.f32 0.0, %v1021
      %1023 = vdwg.mxu0
      %1024 = vmatpush.msra.mxu0 0.0
      %1025 = vmatpush.msra.mxu0 0.0
      %1026 = vmatpush.msra.mxu0 0.0
      %1027 = vmatpush.msra.mxu0 0.0
      %1028 = vmatpush.msra.mxu0 0.0
      %1029 = vmatpush.msra.mxu0 0.0
      %1030 = vmatpush.msra.mxu0 0.0
      %1031 = vmatpush.msra.mxu0 0.0
      %1032 = vmatpush.msra.mxu0 0.0
      %1033 = vmatpush.msra.mxu0 0.0
      %1034 = vmatpush.msra.mxu0 0.0
      %1035 = vmatpush.msra.mxu0 0.0
      %1036 = vmatpush.msra.mxu0 0.0
      %1037 = vmatpush.msra.mxu0 0.0
      %1038 = vmatpush.msra.mxu0 0.0
      %1039 = vmatpush.msra.mxu0 %v997
      %1040 = vmatmul.f32.gmra.mxu0 %v1002
      %v1041 = vpop.f32.mrf.mxu0
      %v1042 = vadd.f32 0.0, %v1041
      %1043 = vdwg.mxu0
      %1044 = vmatpush.msra.mxu0 0.0
      %1045 = vmatpush.msra.mxu0 0.0
      %1046 = vmatpush.msra.mxu0 0.0
      %1047 = vmatpush.msra.mxu0 0.0
      %1048 = vmatpush.msra.mxu0 0.0
      %1049 = vmatpush.msra.mxu0 0.0
      %1050 = vmatpush.msra.mxu0 0.0
      %1051 = vmatpush.msra.mxu0 0.0
      %1052 = vmatpush.msra.mxu0 0.0
      %1053 = vmatpush.msra.mxu0 0.0
      %1054 = vmatpush.msra.mxu0 0.0
      %1055 = vmatpush.msra.mxu0 0.0
      %1056 = vmatpush.msra.mxu0 0.0
      %1057 = vmatpush.msra.mxu0 0.0
      %1058 = vmatpush.msra.mxu0 0.0
      %1059 = vmatpush.msra.mxu0 %v994
      %1060 = vmatmul.f32.gmra.mxu0 %v1002
      %v1061 = vpop.f32.mrf.mxu0
      %v1062 = vadd.f32 0.0, %v1061
      %1063 = vdwg.mxu0
      %v1064 = vadd.f32 %v984, %v1022
      %v1065 = vadd.f32 %v985, %v1042
      %v1066 = vadd.f32 %v986, %v1062
      %v1067 = vld [vmem:[%s4] sm:$0x7]
      %v1069 = vperm.slane %v1067, 0
      %v1070 = vperm.slane %v1067, 1
      %v1071 = vperm.slane %v1067, 2
      %v1075 = vmul.f32 %v1064, %v1069
      %v1076 = vmul.f32 %v1065, %v1070
      %v1077 = vmul.f32 %v1066, %v1071
      %v1078 = vadd.f32 %v1075, %v1076
      %vm1079 = vcmask 261120
      %v1080 = vsel %vm1079, %v1077, 0.0
      %v1081 = vadd.f32 %v1078, %v1080
      %1082 = vadd.xlane.f32.xlu0 %v1081
      %v1083 = vpop.xlane.xlu0 %1082
      %v1084 = vmul.f32 %v1075, %v1075
      %v1085 = vmul.f32 %v1076, %v1076
      %v1086 = vmul.f32 %v1077, %v1077
      %v1087 = vadd.f32 %v1084, %v1085
      %v1088 = vsel %vm1079, %v1086, 0.0
      %v1089 = vadd.f32 %v1087, %v1088
      %1090 = vadd.xlane.f32.xlu0 %v1089
      %v1091 = vpop.xlane.xlu0 %1090
      %v1092 = vmul.f32 %v1083, 0.00390625
      %v1093 = vmul.f32 %v1091, 0.00390625
      %v1094 = vmul.f32 %v1092, %v1092
      %v1095 = vsub.f32 %v1093, %v1094
      %v1096 = vmax.f32 %v1095, 0.0
      %v1097 = vld [vmem:[%s336] sm:$0xff]
      %v1098 = vadd.f32 %v1096, 1e-05
      %v1099 = vrsqrt.pop %v1098
      %v1100 = vmul.f32 %v1099, %v1098
      %v1101 = vmul.f32 %v1100, %v1099
      %v1102 = vmul.f32 0.5, %v1101
      %v1103 = vsub.f32 1.5, %v1102
      %v1104 = vmul.f32 %v1099, %v1103
      %vm1105 = vweird.f32 %v1098
      %vm1106 = vweird.f32 %v1099
      %vm1107 = vmor %vm1105, %vm1106
      %v1108 = vsel %vm1107, %v1099, %v1104
      %v1109 = vmul.f32 %v1097, %v1108
      %v1110 = vld [vmem:[%s340] sm:$0xff]
      %v1111 = vmul.f32 %v1092, %v1109
      %v1112 = vsub.f32 %v1110, %v1111
      %1114 = vset.pattern.permute.xlu0 0
      %1115 = vperm.xlu0 %1114, %v1109
      %v1116 = vpop.permute.xlu0 %1115
      %v1118 = vmul.f32 %v1064, %v1116
      %v1119 = vmul.f32 %v1065, %v1116
      %v1120 = vmul.f32 %v1066, %v1116
      %1122 = vset.pattern.permute.xlu0 0
      %1123 = vperm.xlu0 %1122, %v1112
      %v1124 = vpop.permute.xlu0 %1123
      %v1126 = vadd.f32 %v1118, %v1124
      %v1127 = vadd.f32 %v1119, %v1124
      %v1128 = vadd.f32 %v1120, %v1124
      %v1129 = vld [vmem:[%s349] sm:$0xff]
      %v1130 = vld [vmem:[%s349 + $0x8] sm:$0xff]
      %v1131 = vld [vmem:[%s349 + $0x10] sm:$0xff]
      %v1132 = vadd.f32 %v1126, %v1129
      %v1133 = vadd.f32 %v1127, %v1130
      %v1134 = vadd.f32 %v1128, %v1131
      %1135 = vst [vmem:[%s358] sm:$0xff] %v1132
      %1136 = vst [vmem:[%s358 + $0x8] sm:$0xff] %v1133
      %1137 = vst.msk [vmem:[%s358 + $0x10] sm:$0xff] %vm1079, %v1134
      %p1138 = scmp.lt.s32.totalorder %s21, 1
      %s1139 = scalar_select %p1138, %s21, 1
      %p1140 = scmp.lt.s32.totalorder %s22, 0
      %s1141 = scalar_select %p1140, %s22, 0
      %s1142 = smul.addr %s1141, 3
      %s1143 = smul.addr %s1139, 3
      %s1144 = sadd.s32 %s1142, %s1143
      %s1145 = smul.addr %s1144, 8
      %s1146 = scalar_lea.vmem %s6, %s1145
      // Predicated region
      $region45: #{residual_layer_forward.3} parent=43 // pred_check
        %p1147 = pneg %p202
      $region46: #{residual_layer_forward.3} parent=43 // pred_check_branch
        %1149 = sbr.rel (%p1147) target = $region48
      $region47: #{residual_layer_forward.3} parent=43 // pred_region
        _
      $region48: #{residual_layer_forward.3} parent=43 // pred_fallthru
        _
    $region44: #{residual_layer_forward.3} parent=5 // pred_fallthru
      _
    %p1150 = scmp.le.s32.totalorder 2, %s12
    // Predicated region
    $region49: #{residual_layer_forward.3} parent=5 // pred_check
      %p1151 = pneg %p1150
    $region50: #{residual_layer_forward.3} parent=5 // pred_check_branch
      %1153 = sbr.rel (%p1151) target = $region52
    $region51: #{residual_layer_forward.3} parent=5 // pred_region
      %s1154 = ssub.s32 %s12, 2
      // Predicated region
      $region53: #{residual_layer_forward.3} parent=51 // pred_check
        %p1155 = pneg %p208
      $region54: #{residual_layer_forward.3} parent=51 // pred_check_branch
        %1157 = sbr.rel (%p1155) target = $region56
      $region55: #{residual_layer_forward.3} parent=51 // pred_region
        %p1158 = scmp.lt.s32.totalorder %s23, 1
        %s1159 = scalar_select %p1158, %s23, 1
        %p1160 = scmp.lt.s32.totalorder %s24, 0
        %s1161 = scalar_select %p1160, %s24, 0
        %s1162 = smul.addr %s1161, 3
        %s1163 = smul.addr %s1159, 3
        %s1164 = sadd.s32 %s1162, %s1163
        %s1165 = smul.addr %s1164, 8
        %s1166 = scalar_lea.vmem %s6, %s1165
      $region56: #{residual_layer_forward.3} parent=51 // pred_fallthru
        _
    $region52: #{residual_layer_forward.3} parent=5 // pred_fallthru
      _
  $region6: #{residual_layer_forward.3} parent=0 // loop_footer
    %s16 = sadd.s32 1, %s12
  $region7: #{residual_layer_forward.3} parent=0 // loop_footer_branch
    %11 = sbr.rel target = $region3
  $region8: #{residual_layer_forward.3} parent=0 // loop_exit
    _

</llo_original>
